<compile_context>
chip_gen: v5e
topology: v5e:2x2
jax: 0.10.0
libtpu: 0.0.40
codegen_flags: <defaults>
</compile_context>

<pallas_src>
import functools

import jax
import jax.numpy as jnp
from jax.experimental import pallas as pl
from jax.experimental.pallas import tpu as pltpu

G = 128           # padded lane width for every gate / state / output block
NEG_INF = -1e30   # mask for padded logit lanes (exp -> 0 in the softmax)


def rnn_seq_kernel(catx_ref, h0_ref, wa_ref, ba_ref, wb_ref, bb_ref,
                   wc_ref, bc_ref, logp_ref, hid_ref, xa_scr):
    """One grid step == one timestep of the original module's forward()."""
    t = pl.program_id(0)

    @pl.when(t == 0)
    def _init():
        # Right half of the fused activation row carries the hidden state.
        xa_scr[:, G:2 * G] = h0_ref[...]

    # Left half = this step's padded [category | input] row.
    xa_scr[:, 0:G] = catx_ref[0]
    h_prev = xa_scr[:, G:2 * G]

    def gru(gates, h):
        # gates: (1, 6G) = [gi_r gi_z gi_n gh_r gh_z gh_n], 128-lane aligned.
        r = jax.nn.sigmoid(gates[:, 0:G] + gates[:, 3 * G:4 * G])
        z = jax.nn.sigmoid(gates[:, G:2 * G] + gates[:, 4 * G:5 * G])
        n = jnp.tanh(gates[:, 2 * G:3 * G] + r * gates[:, 5 * G:6 * G])
        return (1.0 - z) * n + z * h

    # --- fused dot A: input_2_hidden gates + cat-part of output_2_output ---
    ga = (jnp.dot(xa_scr[...], wa_ref[...],
                  preferred_element_type=jnp.float32) + ba_ref[...])
    h1 = gru(ga[:, 0:6 * G], h_prev)
    logits_cat = ga[:, 6 * G:7 * G]

    # --- fused dot B: hidden_2_output GRU (input = hidden = h1) ---
    gb = (jnp.dot(h1, wb_ref[...],
                  preferred_element_type=jnp.float32) + bb_ref[...])
    h2 = gru(gb, h1)

    # --- fused dot C: hidden_2_hidden + h2-part of output_2_output ---
    gc = (jnp.dot(h2, wc_ref[...],
                  preferred_element_type=jnp.float32) + bc_ref[...])
    hid_new = gc[:, 0:G]
    logits = logits_cat + gc[:, G:2 * G]   # padded lanes stay at -1e30

    # TODO(synk): nn.Dropout(0.1) is identity (eval mode); no in-kernel RNG mask.

    # log_softmax over dim 1 (padded lanes contribute exp(-1e30 - m) == 0).
    m = jnp.max(logits, axis=-1, keepdims=True)
    lse = jnp.log(jnp.sum(jnp.exp(logits - m), axis=-1, keepdims=True)) + m
    logp_ref[0] = logits - lse

    hid_ref[...] = hid_new
    # Carry hidden_2_hidden(h2) to the next timestep (matches PyTorch usage
    # where the returned hidden is fed back into forward()).
    xa_scr[:, G:2 * G] = hid_new


def init_params(key, n_categories, input_size, hidden_size, output_size):
    """Deterministic parameter init mirroring the PyTorch module's shapes."""
    ks = jax.random.split(key, 12)
    H = hidden_size

    def u(k, shape, fan):
        bound = 1.0 / jnp.sqrt(jnp.asarray(fan, jnp.float32))
        return jax.random.uniform(k, shape, jnp.float32, -bound, bound)

    p = {}
    in1 = n_categories + input_size
    # nn.GRU(n_categories + input_size, hidden_size), gate order r,z,n
    p["w_ih1"] = u(ks[0], (3 * H, in1), H)
    p["w_hh1"] = u(ks[1], (3 * H, H), H)
    p["b_ih1"] = u(ks[2], (3 * H,), H)
    p["b_hh1"] = u(ks[3], (3 * H,), H)
    # nn.GRU(hidden_size, hidden_size)
    p["w_ih2"] = u(ks[4], (3 * H, H), H)
    p["w_hh2"] = u(ks[5], (3 * H, H), H)
    p["b_ih2"] = u(ks[6], (3 * H,), H)
    p["b_hh2"] = u(ks[7], (3 * H,), H)
    # nn.Linear(n_categories + hidden_size, output_size)
    in_o = n_categories + H
    p["w_o2o"] = u(ks[8], (output_size, in_o), in_o)
    p["b_o2o"] = u(ks[9], (output_size,), in_o)
    # nn.Linear(hidden_size, hidden_size)
    p["w_h2h"] = u(ks[10], (H, H), H)
    p["b_h2h"] = u(ks[11], (H,), H)
    return p


def pack_params(params, n_categories, input_size, hidden_size, output_size):
    """One-time packing of PyTorch-layout weights into three fused,
    128-lane-aligned block matrices (+ bias rows) for the kernel."""
    H = hidden_size
    Kc = n_categories + input_size
    assert Kc <= G and H <= G and output_size <= G

    w_ih1_t = params["w_ih1"].T   # (Kc, 3H)
    w_hh1_t = params["w_hh1"].T   # (H, 3H)
    w_ih2_t = params["w_ih2"].T   # (H, 3H)
    w_hh2_t = params["w_hh2"].T   # (H, 3H)
    w_o2o_t = params["w_o2o"].T   # (n_cat + H, out)
    w_h2h_t = params["w_h2h"].T   # (H, H)

    wa = jnp.zeros((2 * G, 7 * G), jnp.float32)
    ba = jnp.zeros((1, 7 * G), jnp.float32)
    wb = jnp.zeros((G, 6 * G), jnp.float32)
    bb = jnp.zeros((1, 6 * G), jnp.float32)
    for g in range(3):
        wa = wa.at[0:Kc, g * G:g * G + H].set(w_ih1_t[:, g * H:(g + 1) * H])
        wa = wa.at[G:G + H, 3 * G + g * G:3 * G + g * G + H].set(
            w_hh1_t[:, g * H:(g + 1) * H])
        ba = ba.at[0, g * G:g * G + H].set(params["b_ih1"][g * H:(g + 1) * H])
        ba = ba.at[0, 3 * G + g * G:3 * G + g * G + H].set(
            params["b_hh1"][g * H:(g + 1) * H])

        wb = wb.at[0:H, g * G:g * G + H].set(w_ih2_t[:, g * H:(g + 1) * H])
        wb = wb.at[0:H, 3 * G + g * G:3 * G + g * G + H].set(
            w_hh2_t[:, g * H:(g + 1) * H])
        bb = bb.at[0, g * G:g * G + H].set(params["b_ih2"][g * H:(g + 1) * H])
        bb = bb.at[0, 3 * G + g * G:3 * G + g * G + H].set(
            params["b_hh2"][g * H:(g + 1) * H])

    # cat-part of output_2_output lives in Wa; padded logit lanes get -1e30 bias.
    wa = wa.at[0:n_categories, 6 * G:6 * G + output_size].set(
        w_o2o_t[:n_categories, :])
    ba = ba.at[0, 6 * G:6 * G + output_size].set(params["b_o2o"])
    ba = ba.at[0, 6 * G + output_size:7 * G].set(NEG_INF)

    wc = jnp.zeros((G, 2 * G), jnp.float32)
    bc = jnp.zeros((1, 2 * G), jnp.float32)
    wc = wc.at[0:H, 0:H].set(w_h2h_t)
    wc = wc.at[0:H, G:G + output_size].set(w_o2o_t[n_categories:, :])
    bc = bc.at[0, 0:H].set(params["b_h2h"])

    return {"wa": wa, "ba": ba, "wb": wb, "bb": bb, "wc": wc, "bc": bc}


def rnn_sequence(packed, category, inputs_seq, hidden0, *,
                 n_categories, input_size, hidden_size, output_size):
    """Run T timesteps of the module's forward() in one pallas_call.
    Returns (log_probs (T, output_size), final hidden (1, 1, hidden_size))."""
    H = hidden_size
    T = inputs_seq.shape[0]

    # Per-step [category | input] rows, zero-padded to 128 lanes.
    catx = jnp.zeros((T, 1, G), jnp.float32)
    catx = catx.at[:, 0, 0:n_categories].set(
        jnp.broadcast_to(category.reshape(1, n_categories).astype(jnp.float32),
                         (T, n_categories)))
    catx = catx.at[:, 0, n_categories:n_categories + input_size].set(
        inputs_seq.astype(jnp.float32))

    h0 = jnp.zeros((1, G), jnp.float32)
    h0 = h0.at[0, 0:H].set(hidden0.reshape(H).astype(jnp.float32))

    def resident(shape):
        return pl.BlockSpec(shape, lambda t: (0,) * len(shape))

    logp_pad, hid_pad = pl.pallas_call(
        rnn_seq_kernel,
        out_shape=(jax.ShapeDtypeStruct((T, 1, G), jnp.float32),
                   jax.ShapeDtypeStruct((1, G), jnp.float32)),
        grid_spec=pltpu.PrefetchScalarGridSpec(
            num_scalar_prefetch=0,
            grid=(T,),
            in_specs=[
                pl.BlockSpec((1, 1, G), lambda t: (t, 0, 0)),    # per-step catx
                resident((1, G)),                                # h0
                resident((2 * G, 7 * G)), resident((1, 7 * G)),  # Wa, ba
                resident((G, 6 * G)), resident((1, 6 * G)),      # Wb, bb
                resident((G, 2 * G)), resident((1, 2 * G)),      # Wc, bc
            ],
            out_specs=(
                pl.BlockSpec((1, 1, G), lambda t: (t, 0, 0)),    # per-step logp
                resident((1, G)),                                # final hidden
            ),
            scratch_shapes=[pltpu.VMEM((1, 2 * G), jnp.float32)],
        ),
        compiler_params=pltpu.CompilerParams(
            dimension_semantics=("arbitrary",)),
    )(catx, h0, packed["wa"], packed["ba"], packed["wb"], packed["bb"],
      packed["wc"], packed["bc"])

    log_probs = logp_pad[:, 0, :output_size]
    hidden = hid_pad[:, :H].reshape(1, 1, H)
    return log_probs, hidden


def rnn_forward(packed, category, inp, hidden, *,
                n_categories, input_size, hidden_size, output_size):
    """Single-step forward() matching the PyTorch module:
    returns (log_probs (1, output_size), new hidden (1, 1, hidden_size))."""
    logp, hid = rnn_sequence(
        packed, category, inp.reshape(1, input_size), hidden,
        n_categories=n_categories, input_size=input_size,
        hidden_size=hidden_size, output_size=output_size)
    return logp.reshape(1, output_size), hid


# ----------------------- pure-JAX reference (PyTorch semantics) --------------
def _gru_cell_ref(x, h, w_ih, w_hh, b_ih, b_hh):
    H = h.shape[-1]
    hi = jax.lax.Precision.HIGHEST
    gi = jnp.dot(x, w_ih.T, precision=hi) + b_ih
    gh = jnp.dot(h, w_hh.T, precision=hi) + b_hh
    r = jax.nn.sigmoid(gi[:, 0:H] + gh[:, 0:H])
    z = jax.nn.sigmoid(gi[:, H:2 * H] + gh[:, H:2 * H])
    n = jnp.tanh(gi[:, 2 * H:3 * H] + r * gh[:, 2 * H:3 * H])
    return (1.0 - z) * n + z * h


def rnn_ref_step(params, category, x, hidden, *,
                 n_categories, input_size, hidden_size, output_size):
    hi = jax.lax.Precision.HIGHEST
    H = hidden_size
    cat = category.reshape(1, n_categories)
    x = x.reshape(1, input_size)
    h = hidden.reshape(1, H)
    inp_comb = jnp.concatenate([cat, x], axis=1)
    h1 = _gru_cell_ref(inp_comb, h, params["w_ih1"], params["w_hh1"],
                       params["b_ih1"], params["b_hh1"])
    h2 = _gru_cell_ref(h1, h1, params["w_ih2"], params["w_hh2"],
                       params["b_ih2"], params["b_hh2"])
    out_comb = jnp.concatenate([cat, h2], axis=1)
    new_hidden = jnp.dot(h2, params["w_h2h"].T, precision=hi) + params["b_h2h"]
    logits = jnp.dot(out_comb, params["w_o2o"].T, precision=hi) + params["b_o2o"]
    logp = jax.nn.log_softmax(logits, axis=1)
    return logp, new_hidden.reshape(1, 1, H)


if __name__ == "__main__":
    n_categories = 8
    input_size = 16
    hidden_size = 32
    output_size = 16
    seq_len = 8

    key = jax.random.PRNGKey(0)
    k_param, k_cat, k_inp = jax.random.split(key, 3)

    params = init_params(k_param, n_categories, input_size, hidden_size,
                         output_size)
    # One-time weight packing -> off the per-step hot path.
    packed = pack_params(params, n_categories, input_size, hidden_size,
                         output_size)

    category = jax.nn.one_hot(
        jax.random.randint(k_cat, (), 0, n_categories),
        n_categories).reshape(1, n_categories)
    inputs_seq = jax.random.normal(k_inp, (seq_len, input_size), jnp.float32)
    hidden0 = jnp.zeros((1, 1, hidden_size), jnp.float32)   # RNN.initHidden()

    dims = dict(n_categories=n_categories, input_size=input_size,
                hidden_size=hidden_size, output_size=output_size)
    run_seq = jax.jit(functools.partial(rnn_sequence, **dims))

    # Whole sequence (T steps) in ONE kernel launch with weights resident in VMEM.
    log_probs_seq, final_hidden = run_seq(packed, category, inputs_seq, hidden0)
    jax.block_until_ready((log_probs_seq, final_hidden))

    # Single-step call matching the module's forward() signature (T = 1).
    log_probs_1, hidden_1 = rnn_forward(packed, category, inputs_seq[0],
                                        hidden0, **dims)
    jax.block_until_ready((log_probs_1, hidden_1))

    # Pure-JAX reference loop (mirrors the PyTorch module step by step).
    ref_logps = []
    h = hidden0
    for t in range(seq_len):
        lp, h = rnn_ref_step(params, category, inputs_seq[t], h, **dims)
        ref_logps.append(lp)
    ref_logps = jnp.concatenate(ref_logps, axis=0)

    assert log_probs_seq.shape == (seq_len, output_size)
    assert final_hidden.shape == (1, 1, hidden_size)
    assert log_probs_1.shape == (1, output_size)
    assert hidden_1.shape == (1, 1, hidden_size)
    # log_softmax rows must exp-sum to 1.
    assert jnp.allclose(jnp.sum(jnp.exp(log_probs_seq), axis=-1), 1.0, atol=1e-4)
    # Kernel matches the PyTorch-semantics reference.
    assert jnp.allclose(log_probs_seq, ref_logps, atol=2e-3, rtol=2e-3)
    assert jnp.allclose(final_hidden, h, atol=2e-3, rtol=2e-3)
    assert jnp.allclose(log_probs_1, ref_logps[0:1], atol=2e-3, rtol=2e-3)

    print("KERNEL_OK")
</pallas_src>

<mosaic_0001>
module attributes {stable_mosaic.version = 11 : i64} {
  func.func @rnn_seq_kernel(%arg0: i32, %arg1: memref<1x1x128xf32, #tpu.memory_space<vmem>>, %arg2: memref<1x128xf32, #tpu.memory_space<vmem>>, %arg3: memref<256x896xf32, #tpu.memory_space<vmem>>, %arg4: memref<1x896xf32, #tpu.memory_space<vmem>>, %arg5: memref<128x768xf32, #tpu.memory_space<vmem>>, %arg6: memref<1x768xf32, #tpu.memory_space<vmem>>, %arg7: memref<128x256xf32, #tpu.memory_space<vmem>>, %arg8: memref<1x256xf32, #tpu.memory_space<vmem>>, %arg9: memref<1x1x128xf32, #tpu.memory_space<vmem>>, %arg10: memref<1x128xf32, #tpu.memory_space<vmem>>, %arg11: memref<1x256xf32, #tpu.memory_space<vmem>>) attributes {dimension_semantics = [#tpu.dimension_semantics<arbitrary>], iteration_bounds = array<i64: 8>, scalar_prefetch = 0 : i64, scratch_operands = 1 : i64, tpu.core_type = #tpu.core_type<tc>, window_params = [{transform_indices = @transform_0, window_bounds = array<i64: 1, 1, 128>}, {pipeline_mode = #tpu.pipeline_mode<synchronous>, transform_indices = @transform_1, window_bounds = array<i64: 1, 128>}, {pipeline_mode = #tpu.pipeline_mode<synchronous>, transform_indices = @transform_2, window_bounds = array<i64: 256, 896>}, {pipeline_mode = #tpu.pipeline_mode<synchronous>, transform_indices = @transform_3, window_bounds = array<i64: 1, 896>}, {pipeline_mode = #tpu.pipeline_mode<synchronous>, transform_indices = @transform_4, window_bounds = array<i64: 128, 768>}, {pipeline_mode = #tpu.pipeline_mode<synchronous>, transform_indices = @transform_5, window_bounds = array<i64: 1, 768>}, {pipeline_mode = #tpu.pipeline_mode<synchronous>, transform_indices = @transform_6, window_bounds = array<i64: 128, 256>}, {pipeline_mode = #tpu.pipeline_mode<synchronous>, transform_indices = @transform_7, window_bounds = array<i64: 1, 256>}, {transform_indices = @transform_8, window_bounds = array<i64: 1, 1, 128>}, {pipeline_mode = #tpu.pipeline_mode<synchronous>, transform_indices = @transform_9, window_bounds = array<i64: 1, 128>}]} {
    %c0_i32 = arith.constant 0 : i32
    %0 = arith.cmpi eq, %arg0, %c0_i32 : i32
    %1 = arith.extui %0 : i1 to i32
    %c0_i32_0 = arith.constant 0 : i32
    %2 = arith.cmpi ne, %1, %c0_i32_0 : i32
    scf.if %2 {
      %c0_37 = arith.constant 0 : index
      %c0_38 = arith.constant 0 : index
      %93 = vector.load %arg2[%c0_37, %c0_38] : memref<1x128xf32, #tpu.memory_space<vmem>>, vector<1x128xf32>
      %c0_39 = arith.constant 0 : index
      %c128_40 = arith.constant 128 : index
      %94 = vector.load %arg11[%c0_39, %c128_40] : memref<1x256xf32, #tpu.memory_space<vmem>>, vector<1x128xf32>
      tpu.vector_store %arg11[%c0_39, %c128_40], %93 {strides = array<i32>} : memref<1x256xf32, #tpu.memory_space<vmem>>, vector<1x128xf32>,
    } else {
    }
    %c0 = arith.constant 0 : index
    %c0_1 = arith.constant 0 : index
    %c0_2 = arith.constant 0 : index
    %3 = vector.load %arg1[%c0, %c0_1, %c0_2] : memref<1x1x128xf32, #tpu.memory_space<vmem>>, vector<1x1x128xf32>
    %4 = vector.shape_cast %3 : vector<1x1x128xf32> to vector<1x128xf32>
    %c0_3 = arith.constant 0 : index
    %c0_4 = arith.constant 0 : index
    %5 = vector.load %arg11[%c0_3, %c0_4] : memref<1x256xf32, #tpu.memory_space<vmem>>, vector<1x128xf32>
    tpu.vector_store %arg11[%c0_3, %c0_4], %4 {strides = array<i32>} : memref<1x256xf32, #tpu.memory_space<vmem>>, vector<1x128xf32>,
    %c0_5 = arith.constant 0 : index
    %c128 = arith.constant 128 : index
    %6 = vector.load %arg11[%c0_5, %c128] : memref<1x256xf32, #tpu.memory_space<vmem>>, vector<1x128xf32>
    %c0_6 = arith.constant 0 : index
    %c0_7 = arith.constant 0 : index
    %7 = vector.load %arg11[%c0_6, %c0_7] : memref<1x256xf32, #tpu.memory_space<vmem>>, vector<1x256xf32>
    %c0_8 = arith.constant 0 : index
    %c0_9 = arith.constant 0 : index
    %8 = vector.load %arg3[%c0_8, %c0_9] : memref<256x896xf32, #tpu.memory_space<vmem>>, vector<256x896xf32>
    %cst = arith.constant dense<0.000000e+00> : vector<1x896xf32>
    %9 = tpu.matmul %7, %8, %cst {dimension_numbers = #tpu.dot_dimension_numbers<[1], [0], [0], [1], [0, 0, 1, 1], [], []>} : vector<1x256xf32>, vector<256x896xf32>, vector<1x896xf32> -> vector<1x896xf32>
    %c0_10 = arith.constant 0 : index
    %c0_11 = arith.constant 0 : index
    %10 = vector.load %arg4[%c0_10, %c0_11] : memref<1x896xf32, #tpu.memory_space<vmem>>, vector<1x896xf32>
    %11 = arith.addf %9, %10 : vector<1x896xf32>
    %12 = vector.extract_strided_slice %11 {offsets = [0, 0], sizes = [1, 768], strides = [1, 1]} : vector<1x896xf32> to vector<1x768xf32>
    %13 = vector.extract_strided_slice %12 {offsets = [0, 0], sizes = [1, 128], strides = [1, 1]} : vector<1x768xf32> to vector<1x128xf32>
    %14 = vector.extract_strided_slice %12 {offsets = [0, 384], sizes = [1, 128], strides = [1, 1]} : vector<1x768xf32> to vector<1x128xf32>
    %15 = arith.addf %13, %14 : vector<1x128xf32>
    %16 = arith.negf %15 : vector<1x128xf32>
    %17 = math.exp %16 : vector<1x128xf32>
    %cst_12 = arith.constant 1.000000e+00 : f32
    %18 = vector.broadcast %cst_12 : f32 to vector<1x128xf32>
    %19 = arith.addf %18, %17 : vector<1x128xf32>
    %20 = arith.divf %18, %19 : vector<1x128xf32>
    %21 = vector.extract_strided_slice %12 {offsets = [0, 128], sizes = [1, 128], strides = [1, 1]} : vector<1x768xf32> to vector<1x128xf32>
    %22 = vector.extract_strided_slice %12 {offsets = [0, 512], sizes = [1, 128], strides = [1, 1]} : vector<1x768xf32> to vector<1x128xf32>
    %23 = arith.addf %21, %22 : vector<1x128xf32>
    %24 = arith.negf %23 : vector<1x128xf32>
    %25 = math.exp %24 : vector<1x128xf32>
    %cst_13 = arith.constant 1.000000e+00 : f32
    %26 = vector.broadcast %cst_13 : f32 to vector<1x128xf32>
    %27 = arith.addf %26, %25 : vector<1x128xf32>
    %28 = arith.divf %26, %27 : vector<1x128xf32>
    %29 = vector.extract_strided_slice %12 {offsets = [0, 256], sizes = [1, 128], strides = [1, 1]} : vector<1x768xf32> to vector<1x128xf32>
    %30 = vector.extract_strided_slice %12 {offsets = [0, 640], sizes = [1, 128], strides = [1, 1]} : vector<1x768xf32> to vector<1x128xf32>
    %31 = arith.mulf %20, %30 : vector<1x128xf32>
    %32 = arith.addf %29, %31 : vector<1x128xf32>
    %33 = math.tanh %32 : vector<1x128xf32>
    %cst_14 = arith.constant 1.000000e+00 : f32
    %34 = vector.broadcast %cst_14 : f32 to vector<1x128xf32>
    %35 = arith.subf %34, %28 : vector<1x128xf32>
    %36 = arith.mulf %35, %33 : vector<1x128xf32>
    %37 = arith.mulf %28, %6 : vector<1x128xf32>
    %38 = arith.addf %36, %37 : vector<1x128xf32>
    %39 = vector.extract_strided_slice %11 {offsets = [0, 768], sizes = [1, 128], strides = [1, 1]} : vector<1x896xf32> to vector<1x128xf32>
    %c0_15 = arith.constant 0 : index
    %c0_16 = arith.constant 0 : index
    %40 = vector.load %arg5[%c0_15, %c0_16] : memref<128x768xf32, #tpu.memory_space<vmem>>, vector<128x768xf32>
    %cst_17 = arith.constant dense<0.000000e+00> : vector<1x768xf32>
    %41 = tpu.matmul %38, %40, %cst_17 {dimension_numbers = #tpu.dot_dimension_numbers<[1], [0], [0], [1], [0, 0, 1, 1], [], []>} : vector<1x128xf32>, vector<128x768xf32>, vector<1x768xf32> -> vector<1x768xf32>
    %c0_18 = arith.constant 0 : index
    %c0_19 = arith.constant 0 : index
    %42 = vector.load %arg6[%c0_18, %c0_19] : memref<1x768xf32, #tpu.memory_space<vmem>>, vector<1x768xf32>
    %43 = arith.addf %41, %42 : vector<1x768xf32>
    %44 = vector.extract_strided_slice %43 {offsets = [0, 0], sizes = [1, 128], strides = [1, 1]} : vector<1x768xf32> to vector<1x128xf32>
    %45 = vector.extract_strided_slice %43 {offsets = [0, 384], sizes = [1, 128], strides = [1, 1]} : vector<1x768xf32> to vector<1x128xf32>
    %46 = arith.addf %44, %45 : vector<1x128xf32>
    %47 = arith.negf %46 : vector<1x128xf32>
    %48 = math.exp %47 : vector<1x128xf32>
    %cst_20 = arith.constant 1.000000e+00 : f32
    %49 = vector.broadcast %cst_20 : f32 to vector<1x128xf32>
    %50 = arith.addf %49, %48 : vector<1x128xf32>
    %51 = arith.divf %49, %50 : vector<1x128xf32>
    %52 = vector.extract_strided_slice %43 {offsets = [0, 128], sizes = [1, 128], strides = [1, 1]} : vector<1x768xf32> to vector<1x128xf32>
    %53 = vector.extract_strided_slice %43 {offsets = [0, 512], sizes = [1, 128], strides = [1, 1]} : vector<1x768xf32> to vector<1x128xf32>
    %54 = arith.addf %52, %53 : vector<1x128xf32>
    %55 = arith.negf %54 : vector<1x128xf32>
    %56 = math.exp %55 : vector<1x128xf32>
    %cst_21 = arith.constant 1.000000e+00 : f32
    %57 = vector.broadcast %cst_21 : f32 to vector<1x128xf32>
    %58 = arith.addf %57, %56 : vector<1x128xf32>
    %59 = arith.divf %57, %58 : vector<1x128xf32>
    %60 = vector.extract_strided_slice %43 {offsets = [0, 256], sizes = [1, 128], strides = [1, 1]} : vector<1x768xf32> to vector<1x128xf32>
    %61 = vector.extract_strided_slice %43 {offsets = [0, 640], sizes = [1, 128], strides = [1, 1]} : vector<1x768xf32> to vector<1x128xf32>
    %62 = arith.mulf %51, %61 : vector<1x128xf32>
    %63 = arith.addf %60, %62 : vector<1x128xf32>
    %64 = math.tanh %63 : vector<1x128xf32>
    %cst_22 = arith.constant 1.000000e+00 : f32
    %65 = vector.broadcast %cst_22 : f32 to vector<1x128xf32>
    %66 = arith.subf %65, %59 : vector<1x128xf32>
    %67 = arith.mulf %66, %64 : vector<1x128xf32>
    %68 = arith.mulf %59, %38 : vector<1x128xf32>
    %69 = arith.addf %67, %68 : vector<1x128xf32>
    %c0_23 = arith.constant 0 : index
    %c0_24 = arith.constant 0 : index
    %70 = vector.load %arg7[%c0_23, %c0_24] : memref<128x256xf32, #tpu.memory_space<vmem>>, vector<128x256xf32>
    %cst_25 = arith.constant dense<0.000000e+00> : vector<1x256xf32>
    %71 = tpu.matmul %69, %70, %cst_25 {dimension_numbers = #tpu.dot_dimension_numbers<[1], [0], [0], [1], [0, 0, 1, 1], [], []>} : vector<1x128xf32>, vector<128x256xf32>, vector<1x256xf32> -> vector<1x256xf32>
    %c0_26 = arith.constant 0 : index
    %c0_27 = arith.constant 0 : index
    %72 = vector.load %arg8[%c0_26, %c0_27] : memref<1x256xf32, #tpu.memory_space<vmem>>, vector<1x256xf32>
    %73 = arith.addf %71, %72 : vector<1x256xf32>
    %74 = vector.extract_strided_slice %73 {offsets = [0, 0], sizes = [1, 128], strides = [1, 1]} : vector<1x256xf32> to vector<1x128xf32>
    %75 = vector.extract_strided_slice %73 {offsets = [0, 128], sizes = [1, 128], strides = [1, 1]} : vector<1x256xf32> to vector<1x128xf32>
    %76 = arith.addf %39, %75 : vector<1x128xf32>
    %cst_28 = arith.constant dense<0xFF800000> : vector<1xf32>
    %77 = vector.multi_reduction <maximumf>, %76, %cst_28 [1] : vector<1x128xf32> to vector<1xf32>
    %78 = vector.shape_cast %77 : vector<1xf32> to vector<1x1xf32>
    %79 = vector.broadcast %78 : vector<1x1xf32> to vector<1x128xf32>
    %80 = arith.subf %76, %79 : vector<1x128xf32>
    %81 = math.exp %80 : vector<1x128xf32>
    %cst_29 = arith.constant dense<0.000000e+00> : vector<1xf32>
    %82 = vector.multi_reduction <add>, %81, %cst_29 [1] : vector<1x128xf32> to vector<1xf32>
    %83 = vector.shape_cast %82 : vector<1xf32> to vector<1x1xf32>
    %84 = math.log %83 : vector<1x1xf32>
    %85 = arith.addf %84, %78 : vector<1x1xf32>
    %86 = vector.broadcast %85 : vector<1x1xf32> to vector<1x128xf32>
    %87 = arith.subf %76, %86 : vector<1x128xf32>
    %c0_30 = arith.constant 0 : index
    %c0_31 = arith.constant 0 : index
    %c0_32 = arith.constant 0 : index
    %88 = vector.load %arg9[%c0_30, %c0_31, %c0_32] : memref<1x1x128xf32, #tpu.memory_space<vmem>>, vector<1x1x128xf32>
    %89 = vector.shape_cast %88 : vector<1x1x128xf32> to vector<1x128xf32>
    %90 = vector.shape_cast %87 : vector<1x128xf32> to vector<1x1x128xf32>
    tpu.vector_store %arg9[%c0_30, %c0_31, %c0_32], %90 {strides = array<i32>} : memref<1x1x128xf32, #tpu.memory_space<vmem>>, vector<1x1x128xf32>,
    %c0_33 = arith.constant 0 : index
    %c0_34 = arith.constant 0 : index
    %91 = vector.load %arg10[%c0_33, %c0_34] : memref<1x128xf32, #tpu.memory_space<vmem>>, vector<1x128xf32>
    tpu.vector_store %arg10[%c0_33, %c0_34], %74 {strides = array<i32>} : memref<1x128xf32, #tpu.memory_space<vmem>>, vector<1x128xf32>,
    %c0_35 = arith.constant 0 : index
    %c128_36 = arith.constant 128 : index
    %92 = vector.load %arg11[%c0_35, %c128_36] : memref<1x256xf32, #tpu.memory_space<vmem>>, vector<1x128xf32>
    tpu.vector_store %arg11[%c0_35, %c128_36], %74 {strides = array<i32>} : memref<1x256xf32, #tpu.memory_space<vmem>>, vector<1x128xf32>,
    return
  }
  func.func @transform_0(%arg0: i32) -> (i32, i32, i32) {
    %c0_i32 = arith.constant 0 : i32
    %c0_i32_0 = arith.constant 0 : i32
    %c0_i32_1 = arith.constant 0 : i32
    return %arg0, %c0_i32, %c0_i32_0 : i32, i32, i32
  }
  func.func @transform_1(%arg0: i32) -> (i32, i32) {
    %c0_i32 = arith.constant 0 : i32
    %c0_i32_0 = arith.constant 0 : i32
    %c0_i32_1 = arith.constant 0 : i32
    return %c0_i32, %c0_i32_0 : i32, i32
  }
  func.func @transform_2(%arg0: i32) -> (i32, i32) {
    %c0_i32 = arith.constant 0 : i32
    %c0_i32_0 = arith.constant 0 : i32
    %c0_i32_1 = arith.constant 0 : i32
    return %c0_i32, %c0_i32_0 : i32, i32
  }
  func.func @transform_3(%arg0: i32) -> (i32, i32) {
    %c0_i32 = arith.constant 0 : i32
    %c0_i32_0 = arith.constant 0 : i32
    %c0_i32_1 = arith.constant 0 : i32
    return %c0_i32, %c0_i32_0 : i32, i32
  }
  func.func @transform_4(%arg0: i32) -> (i32, i32) {
    %c0_i32 = arith.constant 0 : i32
    %c0_i32_0 = arith.constant 0 : i32
    %c0_i32_1 = arith.constant 0 : i32
    return %c0_i32, %c0_i32_0 : i32, i32
  }
  func.func @transform_5(%arg0: i32) -> (i32, i32) {
    %c0_i32 = arith.constant 0 : i32
    %c0_i32_0 = arith.constant 0 : i32
    %c0_i32_1 = arith.constant 0 : i32
    return %c0_i32, %c0_i32_0 : i32, i32
  }
  func.func @transform_6(%arg0: i32) -> (i32, i32) {
    %c0_i32 = arith.constant 0 : i32
    %c0_i32_0 = arith.constant 0 : i32
    %c0_i32_1 = arith.constant 0 : i32
    return %c0_i32, %c0_i32_0 : i32, i32
  }
  func.func @transform_7(%arg0: i32) -> (i32, i32) {
    %c0_i32 = arith.constant 0 : i32
    %c0_i32_0 = arith.constant 0 : i32
    %c0_i32_1 = arith.constant 0 : i32
    return %c0_i32, %c0_i32_0 : i32, i32
  }
  func.func @transform_8(%arg0: i32) -> (i32, i32, i32) {
    %c0_i32 = arith.constant 0 : i32
    %c0_i32_0 = arith.constant 0 : i32
    %c0_i32_1 = arith.constant 0 : i32
    return %arg0, %c0_i32, %c0_i32_0 : i32, i32, i32
  }
  func.func @transform_9(%arg0: i32) -> (i32, i32) {
    %c0_i32 = arith.constant 0 : i32
    %c0_i32_0 = arith.constant 0 : i32
    %c0_i32_1 = arith.constant 0 : i32
    return %c0_i32, %c0_i32_0 : i32, i32
  }
}

</mosaic_0001>

<llo_original>
// kernel: rnn_sequence.1
$region0: #{rnn_sequence.1}
  #allocation0 [shape = 'u32[]', space=smem, size = 0x4, offset = 0x4, fixed_abs, tag = 'smem constant byte address 0x4 - core index']
  #allocation1 [shape = 'u32[72,128]{1,0:T(1,128)}', space=vmem, size = 0x9000, scoped, tag = 'internal scratch']
  #allocation2 [shape = 'f32[1,256]{1,0:T(1,128)}', space=vmem, size = 0x400, scoped, tag = 'scratch operand']
  %s0 = inlined_call_operand.vmem [shape: f32[8,1,128], index: 0, kind: input, shape index: {}]
  %s1 = inlined_call_operand.vmem [shape: f32[1,128], index: 1, kind: input, shape index: {}]
  %s2 = inlined_call_operand.hbm [shape: f32[256,896], index: 2, kind: input, shape index: {}]
  %s3 = inlined_call_operand.vmem [shape: f32[1,896], index: 3, kind: input, shape index: {}]
  %s4 = inlined_call_operand.hbm [shape: f32[128,768], index: 4, kind: input, shape index: {}]
  %s5 = inlined_call_operand.vmem [shape: f32[1,768], index: 5, kind: input, shape index: {}]
  %s6 = inlined_call_operand.hbm [shape: f32[128,256], index: 6, kind: input, shape index: {}]
  %s7 = inlined_call_operand.vmem [shape: f32[1,256], index: 7, kind: input, shape index: {}]
  %s8 = inlined_call_operand.hbm [shape: f32[8,1,128], index: 8, kind: output, shape index: {0}]
  %s9 = inlined_call_operand.vmem [shape: f32[1,128], index: 9, kind: output, shape index: {1}]
  %10 = xla_tuple %s8, %s9
  %s11 = sld [smem:[#allocation0]]
  $region89: #{rnn_sequence.1} parent=0
    _
  %s13 = ssub.s32 1, %s11
  %s14 = scalar_select 0, %s13, %s11
  $region1: #{rnn_sequence.1} parent=0
    #allocation3 [shape = 'u8[917504]{0}', space=vmem, size = 0xe0000, scoped, tag = 'input window, operand 2, single buffered']
    #allocation4 [shape = 's32[2]{0}', space=sflag, size = 0x8, scoped, tag = 'scoped memory for rnn_sequence.1']
    #allocation5 [shape = 's32[2]{0}', space=sflag, size = 0x8, scoped, tag = 'scoped memory for rnn_sequence.1']
    #allocation6 [shape = 'u8[393216]{0}', space=vmem, size = 0x60000, scoped, tag = 'input window, operand 4, single buffered']
    #allocation7 [shape = 's32[1]{0}', space=sflag, size = 0x4, scoped, tag = 'scoped memory for rnn_sequence.1']
    #allocation8 [shape = 'u8[131072]{0}', space=vmem, size = 0x20000, scoped, tag = 'input window, operand 6, single buffered']
    #allocation9 [shape = 'u8[1024]{0}', space=vmem, size = 0x400, scoped, tag = 'output window, operand 0']
    %15 = vsyncpa [#allocation4], 0
    %16 = vsyncpa [#allocation7], 0
    %17 = vsyncpa [#allocation5], 0
    %s18 = scalar_lea.sflag [#allocation5], 1
    %19 = vsyncpa %s18, 0
    loop: start=0, step=1, limit=10
    $region2: #{rnn_sequence.1} parent=1 // loop_pre_header
      _
    $region3: #{rnn_sequence.1} parent=1 // loop_header
      %s21 = sphi 0, %s25
      %p22 = scmp.ge.s32.totalorder %s21, 10
      %s31 = sphi 0, %s33
      %s34 = sphi 0, %s31
      %s35 = sphi 0, %s34
      %s51 = sphi 0, %s35
      %s55 = sphi 0, %s55
      %s57 = sphi 0, %s55
      %s58 = sphi 0, %s57
      %s72 = sphi 0, %s58
      %s76 = sphi 0, %s76
      %s78 = sphi 0, %s76
      %s79 = sphi 0, %s78
      %s93 = sphi 0, %s79
      %s97 = sphi 0, %s97
      %s99 = sphi 0, %s97
      %s100 = sphi 0, %s99
      %s114 = sphi 0, %s100
      %s118 = sphi 0, %s118
      %s120 = sphi 0, %s118
      %s121 = sphi 0, %s120
      %s135 = sphi 0, %s121
      %s139 = sphi 0, %s139
      %s141 = sphi 0, %s139
      %s142 = sphi 0, %s141
      %s156 = sphi 0, %s142
      %s160 = sphi 0, %s160
      %s162 = sphi 0, %s160
      %s163 = sphi 0, %s162
      %s177 = sphi 0, %s163
      %s181 = sphi 0, %s181
      %s183 = sphi 0, %s181
      %s184 = sphi 0, %s183
      %s198 = sphi 0, %s184
      %s204 = sphi 0, %s206
      %s207 = sphi 0, %s204
      %s208 = sphi 0, %s207
      %s224 = sphi 0, %s208
      %s228 = sphi 0, %s228
      %s230 = sphi 0, %s228
      %s231 = sphi 0, %s230
      %s245 = sphi 0, %s231
    $region4: #{rnn_sequence.1} parent=1 // loop_header_branch
      %24 = sbr.rel (%p22) target = $region8
    $region5: #{rnn_sequence.1} parent=1 // loop_body
      %s26 = ssub.s32 %s21, 1
      %s27 = ssub.s32 %s21, 2
      %s28 = sadd.s32 %s21, 1
      %s29 = ssub.s32 %s21, %s28
      %p30 = scmp.eq.s32.totalorder %s29, 0
      %s32 = sadd.s32 %s31, 1
      %s33 = scalar_select %p30, %s31, %s32
      %p36 = pneg %p30
      %p37 = scmp.eq.s32.totalorder %s21, 7
      %p38 = por %p36, %p37
      %p39 = scmp.ne.s32.totalorder %s31, %s34
      %p40 = scmp.eq.s32.totalorder %s21, 0
      %p41 = por %p39, %p40
      %p42 = scmp.ne.s32.totalorder %s31, %s34
      %p43 = scmp.eq.s32.totalorder %s26, 7
      %p44 = por %p42, %p43
      %p45 = scmp.ne.s32.totalorder %s34, %s35
      %p46 = scmp.eq.s32.totalorder %s26, 0
      %p47 = por %p45, %p46
      %p48 = scmp.ne.s32.totalorder %s34, %s35
      %p49 = scmp.eq.s32.totalorder %s27, 7
      %p50 = por %p48, %p49
      %p52 = scmp.ne.s32.totalorder %s35, %s51
      %p53 = scmp.eq.s32.totalorder %s27, 0
      %p54 = por %p52, %p53
      %s56 = sadd.s32 %s55, 1
      %p59 = scmp.eq.s32.totalorder %s21, 7
      %p60 = scmp.ne.s32.totalorder %s55, %s57
      %p61 = scmp.eq.s32.totalorder %s21, 0
      %p62 = por %p60, %p61
      %p63 = scmp.ne.s32.totalorder %s55, %s57
      %p64 = scmp.eq.s32.totalorder %s26, 7
      %p65 = por %p63, %p64
      %p66 = scmp.ne.s32.totalorder %s57, %s58
      %p67 = scmp.eq.s32.totalorder %s26, 0
      %p68 = por %p66, %p67
      %p69 = scmp.ne.s32.totalorder %s57, %s58
      %p70 = scmp.eq.s32.totalorder %s27, 7
      %p71 = por %p69, %p70
      %p73 = scmp.ne.s32.totalorder %s58, %s72
      %p74 = scmp.eq.s32.totalorder %s27, 0
      %p75 = por %p73, %p74
      %s77 = sadd.s32 %s76, 1
      %p80 = scmp.eq.s32.totalorder %s21, 7
      %p81 = scmp.ne.s32.totalorder %s76, %s78
      %p82 = scmp.eq.s32.totalorder %s21, 0
      %p83 = por %p81, %p82
      %p84 = scmp.ne.s32.totalorder %s76, %s78
      %p85 = scmp.eq.s32.totalorder %s26, 7
      %p86 = por %p84, %p85
      %p87 = scmp.ne.s32.totalorder %s78, %s79
      %p88 = scmp.eq.s32.totalorder %s26, 0
      %p89 = por %p87, %p88
      %p90 = scmp.ne.s32.totalorder %s78, %s79
      %p91 = scmp.eq.s32.totalorder %s27, 7
      %p92 = por %p90, %p91
      %p94 = scmp.ne.s32.totalorder %s79, %s93
      %p95 = scmp.eq.s32.totalorder %s27, 0
      %p96 = por %p94, %p95
      %s98 = sadd.s32 %s97, 1
      %p101 = scmp.eq.s32.totalorder %s21, 7
      %p102 = scmp.ne.s32.totalorder %s97, %s99
      %p103 = scmp.eq.s32.totalorder %s21, 0
      %p104 = por %p102, %p103
      %p105 = scmp.ne.s32.totalorder %s97, %s99
      %p106 = scmp.eq.s32.totalorder %s26, 7
      %p107 = por %p105, %p106
      %p108 = scmp.ne.s32.totalorder %s99, %s100
      %p109 = scmp.eq.s32.totalorder %s26, 0
      %p110 = por %p108, %p109
      %p111 = scmp.ne.s32.totalorder %s99, %s100
      %p112 = scmp.eq.s32.totalorder %s27, 7
      %p113 = por %p111, %p112
      %p115 = scmp.ne.s32.totalorder %s100, %s114
      %p116 = scmp.eq.s32.totalorder %s27, 0
      %p117 = por %p115, %p116
      %s119 = sadd.s32 %s118, 1
      %p122 = scmp.eq.s32.totalorder %s21, 7
      %p123 = scmp.ne.s32.totalorder %s118, %s120
      %p124 = scmp.eq.s32.totalorder %s21, 0
      %p125 = por %p123, %p124
      %p126 = scmp.ne.s32.totalorder %s118, %s120
      %p127 = scmp.eq.s32.totalorder %s26, 7
      %p128 = por %p126, %p127
      %p129 = scmp.ne.s32.totalorder %s120, %s121
      %p130 = scmp.eq.s32.totalorder %s26, 0
      %p131 = por %p129, %p130
      %p132 = scmp.ne.s32.totalorder %s120, %s121
      %p133 = scmp.eq.s32.totalorder %s27, 7
      %p134 = por %p132, %p133
      %p136 = scmp.ne.s32.totalorder %s121, %s135
      %p137 = scmp.eq.s32.totalorder %s27, 0
      %p138 = por %p136, %p137
      %s140 = sadd.s32 %s139, 1
      %p143 = scmp.eq.s32.totalorder %s21, 7
      %p144 = scmp.ne.s32.totalorder %s139, %s141
      %p145 = scmp.eq.s32.totalorder %s21, 0
      %p146 = por %p144, %p145
      %p147 = scmp.ne.s32.totalorder %s139, %s141
      %p148 = scmp.eq.s32.totalorder %s26, 7
      %p149 = por %p147, %p148
      %p150 = scmp.ne.s32.totalorder %s141, %s142
      %p151 = scmp.eq.s32.totalorder %s26, 0
      %p152 = por %p150, %p151
      %p153 = scmp.ne.s32.totalorder %s141, %s142
      %p154 = scmp.eq.s32.totalorder %s27, 7
      %p155 = por %p153, %p154
      %p157 = scmp.ne.s32.totalorder %s142, %s156
      %p158 = scmp.eq.s32.totalorder %s27, 0
      %p159 = por %p157, %p158
      %s161 = sadd.s32 %s160, 1
      %p164 = scmp.eq.s32.totalorder %s21, 7
      %p165 = scmp.ne.s32.totalorder %s160, %s162
      %p166 = scmp.eq.s32.totalorder %s21, 0
      %p167 = por %p165, %p166
      %p168 = scmp.ne.s32.totalorder %s160, %s162
      %p169 = scmp.eq.s32.totalorder %s26, 7
      %p170 = por %p168, %p169
      %p171 = scmp.ne.s32.totalorder %s162, %s163
      %p172 = scmp.eq.s32.totalorder %s26, 0
      %p173 = por %p171, %p172
      %p174 = scmp.ne.s32.totalorder %s162, %s163
      %p175 = scmp.eq.s32.totalorder %s27, 7
      %p176 = por %p174, %p175
      %p178 = scmp.ne.s32.totalorder %s163, %s177
      %p179 = scmp.eq.s32.totalorder %s27, 0
      %p180 = por %p178, %p179
      %s182 = sadd.s32 %s181, 1
      %p185 = scmp.eq.s32.totalorder %s21, 7
      %p186 = scmp.ne.s32.totalorder %s181, %s183
      %p187 = scmp.eq.s32.totalorder %s21, 0
      %p188 = por %p186, %p187
      %p189 = scmp.ne.s32.totalorder %s181, %s183
      %p190 = scmp.eq.s32.totalorder %s26, 7
      %p191 = por %p189, %p190
      %p192 = scmp.ne.s32.totalorder %s183, %s184
      %p193 = scmp.eq.s32.totalorder %s26, 0
      %p194 = por %p192, %p193
      %p195 = scmp.ne.s32.totalorder %s183, %s184
      %p196 = scmp.eq.s32.totalorder %s27, 7
      %p197 = por %p195, %p196
      %p199 = scmp.ne.s32.totalorder %s184, %s198
      %p200 = scmp.eq.s32.totalorder %s27, 0
      %p201 = por %p199, %p200
      %s202 = ssub.s32 %s21, %s28
      %p203 = scmp.eq.s32.totalorder %s202, 0
      %s205 = sadd.s32 %s204, 1
      %s206 = scalar_select %p203, %s204, %s205
      %p209 = pneg %p203
      %p210 = scmp.eq.s32.totalorder %s21, 7
      %p211 = por %p209, %p210
      %p212 = scmp.ne.s32.totalorder %s204, %s207
      %p213 = scmp.eq.s32.totalorder %s21, 0
      %p214 = por %p212, %p213
      %p215 = scmp.ne.s32.totalorder %s204, %s207
      %p216 = scmp.eq.s32.totalorder %s26, 7
      %p217 = por %p215, %p216
      %p218 = scmp.ne.s32.totalorder %s207, %s208
      %p219 = scmp.eq.s32.totalorder %s26, 0
      %p220 = por %p218, %p219
      %p221 = scmp.ne.s32.totalorder %s207, %s208
      %p222 = scmp.eq.s32.totalorder %s27, 7
      %p223 = por %p221, %p222
      %p225 = scmp.ne.s32.totalorder %s208, %s224
      %p226 = scmp.eq.s32.totalorder %s27, 0
      %p227 = por %p225, %p226
      %s229 = sadd.s32 %s228, 1
      %p232 = scmp.eq.s32.totalorder %s21, 7
      %p233 = scmp.ne.s32.totalorder %s228, %s230
      %p234 = scmp.eq.s32.totalorder %s21, 0
      %p235 = por %p233, %p234
      %p236 = scmp.ne.s32.totalorder %s228, %s230
      %p237 = scmp.eq.s32.totalorder %s26, 7
      %p238 = por %p236, %p237
      %p239 = scmp.ne.s32.totalorder %s230, %s231
      %p240 = scmp.eq.s32.totalorder %s26, 0
      %p241 = por %p239, %p240
      %p242 = scmp.ne.s32.totalorder %s230, %s231
      %p243 = scmp.eq.s32.totalorder %s27, 7
      %p244 = por %p242, %p243
      %p246 = scmp.ne.s32.totalorder %s231, %s245
      %p247 = scmp.eq.s32.totalorder %s27, 0
      %p248 = por %p246, %p247
      %p249 = scmp.le.s32.totalorder 1, %s21
      %p250 = scmp.lt.s32.totalorder %s21, 9
      %p251 = pnand %p249, %p250
      %p252 = pneg %p251
      // Predicated region
      $region9: #{rnn_sequence.1} parent=5 // pred_check
        _
      $region10: #{rnn_sequence.1} parent=5 // pred_check_branch
        %254 = sbr.rel (%p251) target = $region12
      $region11: #{rnn_sequence.1} parent=5 // pred_region
        %s255 = ssub.s32 %s21, 1
        // Predicated region
        $region13: #{rnn_sequence.1} parent=11 // pred_check
          %p256 = pneg %p68
        $region14: #{rnn_sequence.1} parent=11 // pred_check_branch
          %258 = sbr.rel (%p256) target = $region16
        $region15: #{rnn_sequence.1} parent=11 // pred_region
          _
        $region16: #{rnn_sequence.1} parent=11 // pred_fallthru
          _
        // Predicated region
        $region17: #{rnn_sequence.1} parent=11 // pred_check
          %p259 = pneg %p89
        $region18: #{rnn_sequence.1} parent=11 // pred_check_branch
          %261 = sbr.rel (%p259) target = $region20
        $region19: #{rnn_sequence.1} parent=11 // pred_region
          %263 = vsyncadd [#allocation4], 0
          %s264 = sshll.u32 %s2, 4
          %s265 = int_to_ptr.hbm [resolvable:$true] %s264
          %s266 = sshll.u32 [#allocation3], 4
          %s267 = int_to_ptr.vmem [resolvable:$true] %s266
          %272 = dma.hbm_to_vmem [thread:$0]  %s265, 28672, %s267, [#allocation4], 896, 896, 56
        $region20: #{rnn_sequence.1} parent=11 // pred_fallthru
          _
        // Predicated region
        $region21: #{rnn_sequence.1} parent=11 // pred_check
          %p273 = pneg %p110
        $region22: #{rnn_sequence.1} parent=11 // pred_check_branch
          %275 = sbr.rel (%p273) target = $region24
        $region23: #{rnn_sequence.1} parent=11 // pred_region
          _
        $region24: #{rnn_sequence.1} parent=11 // pred_fallthru
          _
        // Predicated region
        $region25: #{rnn_sequence.1} parent=11 // pred_check
          %p276 = pneg %p131
        $region26: #{rnn_sequence.1} parent=11 // pred_check_branch
          %278 = sbr.rel (%p276) target = $region28
        $region27: #{rnn_sequence.1} parent=11 // pred_region
          %280 = vsyncadd [#allocation7], 0
          %s281 = sshll.u32 %s4, 4
          %s282 = int_to_ptr.hbm [resolvable:$true] %s281
          %s283 = sshll.u32 [#allocation6], 4
          %s284 = int_to_ptr.vmem [resolvable:$true] %s283
          %289 = dma.hbm_to_vmem [thread:$0]  %s282, 12288, %s284, [#allocation7], 768, 768, 48
        $region28: #{rnn_sequence.1} parent=11 // pred_fallthru
          _
        // Predicated region
        $region29: #{rnn_sequence.1} parent=11 // pred_check
          %p290 = pneg %p152
        $region30: #{rnn_sequence.1} parent=11 // pred_check_branch
          %292 = sbr.rel (%p290) target = $region32
        $region31: #{rnn_sequence.1} parent=11 // pred_region
          _
        $region32: #{rnn_sequence.1} parent=11 // pred_fallthru
          _
        // Predicated region
        $region33: #{rnn_sequence.1} parent=11 // pred_check
          %p293 = pneg %p173
        $region34: #{rnn_sequence.1} parent=11 // pred_check_branch
          %295 = sbr.rel (%p293) target = $region36
        $region35: #{rnn_sequence.1} parent=11 // pred_region
          %297 = vsyncadd [#allocation7], 0
          %s298 = sshll.u32 %s6, 4
          %s299 = int_to_ptr.hbm [resolvable:$true] %s298
          %s300 = sshll.u32 [#allocation8], 4
          %s301 = int_to_ptr.vmem [resolvable:$true] %s300
          %306 = dma.hbm_to_vmem [thread:$0]  %s299, 4096, %s301, [#allocation7], 256, 256, 16
        $region36: #{rnn_sequence.1} parent=11 // pred_fallthru
          _
        // Predicated region
        $region37: #{rnn_sequence.1} parent=11 // pred_check
          %p307 = pneg %p194
        $region38: #{rnn_sequence.1} parent=11 // pred_check_branch
          %309 = sbr.rel (%p307) target = $region40
        $region39: #{rnn_sequence.1} parent=11 // pred_region
          _
        $region40: #{rnn_sequence.1} parent=11 // pred_fallthru
          _
      $region12: #{rnn_sequence.1} parent=5 // pred_fallthru
        _
      %p310 = scmp.lt.s32.totalorder %s21, 8
      // Predicated region
      $region41: #{rnn_sequence.1} parent=5 // pred_check
        %p311 = pneg %p310
      $region42: #{rnn_sequence.1} parent=5 // pred_check_branch
        %313 = sbr.rel (%p311) target = $region44
      $region43: #{rnn_sequence.1} parent=5 // pred_region
        // Predicated region
        $region45: #{rnn_sequence.1} parent=43 // pred_check
          %p314 = pneg %p41
        $region46: #{rnn_sequence.1} parent=43 // pred_check_branch
          %316 = sbr.rel (%p314) target = $region48
        $region47: #{rnn_sequence.1} parent=43 // pred_region
          %p317 = scmp.lt.s32.totalorder %s21, 7
          %s318 = scalar_select %p317, %s21, 7
          %s319 = scalar_lea.vmem %s0, %s318
        $region48: #{rnn_sequence.1} parent=43 // pred_fallthru
          _
      $region44: #{rnn_sequence.1} parent=5 // pred_fallthru
        _
      %p320 = scmp.le.s32.totalorder 1, %s21
      %p321 = scmp.lt.s32.totalorder %s21, 9
      %p322 = pnand %p320, %p321
      %p323 = pneg %p322
      // Predicated region
      $region49: #{rnn_sequence.1} parent=5 // pred_check
        _
      $region50: #{rnn_sequence.1} parent=5 // pred_check_branch
        %325 = sbr.rel (%p322) target = $region52
      $region51: #{rnn_sequence.1} parent=5 // pred_region
        %s326 = ssub.s32 %s21, 1
        // Predicated region
        $region53: #{rnn_sequence.1} parent=51 // pred_check
          %p327 = pneg %p89
        $region54: #{rnn_sequence.1} parent=51 // pred_check_branch
          %329 = sbr.rel (%p327) target = $region56
        $region55: #{rnn_sequence.1} parent=51 // pred_region
          %331 = dma.done [#allocation4], 28672
        $region56: #{rnn_sequence.1} parent=51 // pred_fallthru
          _
        // Predicated region
        $region57: #{rnn_sequence.1} parent=51 // pred_check
          %p332 = pneg %p131
        $region58: #{rnn_sequence.1} parent=51 // pred_check_branch
          %334 = sbr.rel (%p332) target = $region60
        $region59: #{rnn_sequence.1} parent=51 // pred_region
          %336 = dma.done [#allocation7], 12288
        $region60: #{rnn_sequence.1} parent=51 // pred_fallthru
          _
        // Predicated region
        $region61: #{rnn_sequence.1} parent=51 // pred_check
          %p337 = pneg %p173
        $region62: #{rnn_sequence.1} parent=51 // pred_check_branch
          %339 = sbr.rel (%p337) target = $region64
        $region63: #{rnn_sequence.1} parent=51 // pred_region
          %341 = dma.done [#allocation7], 4096
        $region64: #{rnn_sequence.1} parent=51 // pred_fallthru
          _
        %p342 = scmp.lt.s32.totalorder %s26, 7
        %s343 = scalar_select %p342, %s26, 7
        %s344 = scalar_lea.vmem %s0, %s343
        %p345 = pneg %p47
        %p346 = pneg %p44
        %p347 = pneg %p68
        %p348 = pneg %p65
        %p349 = pneg %p89
        %p350 = pneg %p86
        %p351 = pneg %p110
        %p352 = pneg %p107
        %p353 = pneg %p131
        %p354 = pneg %p128
        %p355 = pneg %p152
        %p356 = pneg %p149
        %p357 = pneg %p173
        %p358 = pneg %p170
        %p359 = pneg %p194
        %p360 = pneg %p191
        %p361 = pneg %p220
        %p362 = pneg %p217
        %s363 = sand.u32 %s207, 1
        %s364 = scalar_lea.sflag [#allocation5], %s363
        %s365 = sand.u32 %s207, 1
        %s366 = scalar_lea.vmem [#allocation9], %s365
        %p367 = pneg %p241
        %p368 = pneg %p238
        %p369 = scmp.lt.s32.totalorder %s26, 7
        %s370 = scalar_select %p369, %s26, 7
        %s371 = scalar_lea.vmem %s0, %s370
        %p372 = scmp.eq.s32.totalorder %s26, 0
        // Predicated region
        $region65: #{rnn_sequence.1} parent=51 // pred_check
          %p373 = pneg %p372
        $region66: #{rnn_sequence.1} parent=51 // pred_check_branch
          %375 = sbr.rel (%p373) target = $region68
        $region67: #{rnn_sequence.1} parent=51 // pred_region
          %v376 = vld [vmem:[%s1] sm:$0x1]
          %v377 = vlaneseq
          %vm378 = vcmp.ge.s32.totalorder %v377, 0
          %vm379 = vcmp.lt.s32.totalorder %v377, 128
          %vm380 = vmand %vm378, %vm379
          %381 = vst.msk [vmem:[#allocation2 + $0x1] sm:$0x1] %vm380, %v376
        $region68: #{rnn_sequence.1} parent=51 // pred_fallthru
          _
        %v382 = vld [vmem:[%s371] sm:$0x1]
        %v383 = vlaneseq
        %vm384 = vcmp.ge.s32.totalorder %v383, 0
        %vm385 = vcmp.lt.s32.totalorder %v383, 128
        %vm386 = vmand %vm384, %vm385
        %387 = vst.msk [vmem:[#allocation2] sm:$0x1] %vm386, %v382
        %v388 = vld [vmem:[#allocation2 + $0x1] sm:$0x1]
        %v389 = vld [vmem:[#allocation2] sm:$0x3]
        %v390 = vld [vmem:[#allocation3] sm:$0xff]
        %v391 = vld [vmem:[#allocation3 + $0x8] sm:$0xff]
        %v392 = vld [vmem:[#allocation3 + $0x10] sm:$0xff]
        %v393 = vld [vmem:[#allocation3 + $0x18] sm:$0xff]
        %v394 = vld [vmem:[#allocation3 + $0x20] sm:$0xff]
        %v395 = vld [vmem:[#allocation3 + $0x28] sm:$0xff]
        %v396 = vld [vmem:[#allocation3 + $0x30] sm:$0xff]
        %v397 = vld [vmem:[#allocation3 + $0x38] sm:$0xff]
        %v398 = vld [vmem:[#allocation3 + $0x40] sm:$0xff]
        %v399 = vld [vmem:[#allocation3 + $0x48] sm:$0xff]
        %v400 = vld [vmem:[#allocation3 + $0x50] sm:$0xff]
        %v401 = vld [vmem:[#allocation3 + $0x58] sm:$0xff]
        %v402 = vld [vmem:[#allocation3 + $0x60] sm:$0xff]
        %v403 = vld [vmem:[#allocation3 + $0x68] sm:$0xff]
        %v404 = vld [vmem:[#allocation3 + $0x70] sm:$0xff]
        %v405 = vld [vmem:[#allocation3 + $0x78] sm:$0xff]
        %v406 = vld [vmem:[#allocation3 + $0x80] sm:$0xff]
        %v407 = vld [vmem:[#allocation3 + $0x88] sm:$0xff]
        %v408 = vld [vmem:[#allocation3 + $0x90] sm:$0xff]
        %v409 = vld [vmem:[#allocation3 + $0x98] sm:$0xff]
        %v410 = vld [vmem:[#allocation3 + $0xa0] sm:$0xff]
        %v411 = vld [vmem:[#allocation3 + $0xa8] sm:$0xff]
        %v412 = vld [vmem:[#allocation3 + $0xb0] sm:$0xff]
        %v413 = vld [vmem:[#allocation3 + $0xb8] sm:$0xff]
        %v414 = vld [vmem:[#allocation3 + $0xc0] sm:$0xff]
        %v415 = vld [vmem:[#allocation3 + $0xc8] sm:$0xff]
        %v416 = vld [vmem:[#allocation3 + $0xd0] sm:$0xff]
        %v417 = vld [vmem:[#allocation3 + $0xd8] sm:$0xff]
        %v418 = vld [vmem:[#allocation3 + $0xe0] sm:$0xff]
        %v419 = vld [vmem:[#allocation3 + $0xe8] sm:$0xff]
        %v420 = vld [vmem:[#allocation3 + $0xf0] sm:$0xff]
        %v421 = vld [vmem:[#allocation3 + $0xf8] sm:$0xff]
        %v422 = vld [vmem:[#allocation3 + $0x100] sm:$0xff]
        %v423 = vld [vmem:[#allocation3 + $0x108] sm:$0xff]
        %v424 = vld [vmem:[#allocation3 + $0x110] sm:$0xff]
        %v425 = vld [vmem:[#allocation3 + $0x118] sm:$0xff]
        %v426 = vld [vmem:[#allocation3 + $0x120] sm:$0xff]
        %v427 = vld [vmem:[#allocation3 + $0x128] sm:$0xff]
        %v428 = vld [vmem:[#allocation3 + $0x130] sm:$0xff]
        %v429 = vld [vmem:[#allocation3 + $0x138] sm:$0xff]
        %v430 = vld [vmem:[#allocation3 + $0x140] sm:$0xff]
        %v431 = vld [vmem:[#allocation3 + $0x148] sm:$0xff]
        %v432 = vld [vmem:[#allocation3 + $0x150] sm:$0xff]
        %v433 = vld [vmem:[#allocation3 + $0x158] sm:$0xff]
        %v434 = vld [vmem:[#allocation3 + $0x160] sm:$0xff]
        %v435 = vld [vmem:[#allocation3 + $0x168] sm:$0xff]
        %v436 = vld [vmem:[#allocation3 + $0x170] sm:$0xff]
        %v437 = vld [vmem:[#allocation3 + $0x178] sm:$0xff]
        %v438 = vld [vmem:[#allocation3 + $0x180] sm:$0xff]
        %v439 = vld [vmem:[#allocation3 + $0x188] sm:$0xff]
        %v440 = vld [vmem:[#allocation3 + $0x190] sm:$0xff]
        %v441 = vld [vmem:[#allocation3 + $0x198] sm:$0xff]
        %v442 = vld [vmem:[#allocation3 + $0x1a0] sm:$0xff]
        %v443 = vld [vmem:[#allocation3 + $0x1a8] sm:$0xff]
        %v444 = vld [vmem:[#allocation3 + $0x1b0] sm:$0xff]
        %v445 = vld [vmem:[#allocation3 + $0x1b8] sm:$0xff]
        %v446 = vld [vmem:[#allocation3 + $0x1c0] sm:$0xff]
        %v447 = vld [vmem:[#allocation3 + $0x1c8] sm:$0xff]
        %v448 = vld [vmem:[#allocation3 + $0x1d0] sm:$0xff]
        %v449 = vld [vmem:[#allocation3 + $0x1d8] sm:$0xff]
        %v450 = vld [vmem:[#allocation3 + $0x1e0] sm:$0xff]
        %v451 = vld [vmem:[#allocation3 + $0x1e8] sm:$0xff]
        %v452 = vld [vmem:[#allocation3 + $0x1f0] sm:$0xff]
        %v453 = vld [vmem:[#allocation3 + $0x1f8] sm:$0xff]
        %v454 = vld [vmem:[#allocation3 + $0x200] sm:$0xff]
        %v455 = vld [vmem:[#allocation3 + $0x208] sm:$0xff]
        %v456 = vld [vmem:[#allocation3 + $0x210] sm:$0xff]
        %v457 = vld [vmem:[#allocation3 + $0x218] sm:$0xff]
        %v458 = vld [vmem:[#allocation3 + $0x220] sm:$0xff]
        %v459 = vld [vmem:[#allocation3 + $0x228] sm:$0xff]
        %v460 = vld [vmem:[#allocation3 + $0x230] sm:$0xff]
        %v461 = vld [vmem:[#allocation3 + $0x238] sm:$0xff]
        %v462 = vld [vmem:[#allocation3 + $0x240] sm:$0xff]
        %v463 = vld [vmem:[#allocation3 + $0x248] sm:$0xff]
        %v464 = vld [vmem:[#allocation3 + $0x250] sm:$0xff]
        %v465 = vld [vmem:[#allocation3 + $0x258] sm:$0xff]
        %v466 = vld [vmem:[#allocation3 + $0x260] sm:$0xff]
        %v467 = vld [vmem:[#allocation3 + $0x268] sm:$0xff]
        %v468 = vld [vmem:[#allocation3 + $0x270] sm:$0xff]
        %v469 = vld [vmem:[#allocation3 + $0x278] sm:$0xff]
        %v470 = vld [vmem:[#allocation3 + $0x280] sm:$0xff]
        %v471 = vld [vmem:[#allocation3 + $0x288] sm:$0xff]
        %v472 = vld [vmem:[#allocation3 + $0x290] sm:$0xff]
        %v473 = vld [vmem:[#allocation3 + $0x298] sm:$0xff]
        %v474 = vld [vmem:[#allocation3 + $0x2a0] sm:$0xff]
        %v475 = vld [vmem:[#allocation3 + $0x2a8] sm:$0xff]
        %v476 = vld [vmem:[#allocation3 + $0x2b0] sm:$0xff]
        %v477 = vld [vmem:[#allocation3 + $0x2b8] sm:$0xff]
        %v478 = vld [vmem:[#allocation3 + $0x2c0] sm:$0xff]
        %v479 = vld [vmem:[#allocation3 + $0x2c8] sm:$0xff]
        %v480 = vld [vmem:[#allocation3 + $0x2d0] sm:$0xff]
        %v481 = vld [vmem:[#allocation3 + $0x2d8] sm:$0xff]
        %v482 = vld [vmem:[#allocation3 + $0x2e0] sm:$0xff]
        %v483 = vld [vmem:[#allocation3 + $0x2e8] sm:$0xff]
        %v484 = vld [vmem:[#allocation3 + $0x2f0] sm:$0xff]
        %v485 = vld [vmem:[#allocation3 + $0x2f8] sm:$0xff]
        %v486 = vld [vmem:[#allocation3 + $0x300] sm:$0xff]
        %v487 = vld [vmem:[#allocation3 + $0x308] sm:$0xff]
        %v488 = vld [vmem:[#allocation3 + $0x310] sm:$0xff]
        %v489 = vld [vmem:[#allocation3 + $0x318] sm:$0xff]
        %v490 = vld [vmem:[#allocation3 + $0x320] sm:$0xff]
        %v491 = vld [vmem:[#allocation3 + $0x328] sm:$0xff]
        %v492 = vld [vmem:[#allocation3 + $0x330] sm:$0xff]
        %v493 = vld [vmem:[#allocation3 + $0x338] sm:$0xff]
        %v494 = vld [vmem:[#allocation3 + $0x340] sm:$0xff]
        %v495 = vld [vmem:[#allocation3 + $0x348] sm:$0xff]
        %v496 = vld [vmem:[#allocation3 + $0x350] sm:$0xff]
        %v497 = vld [vmem:[#allocation3 + $0x358] sm:$0xff]
        %v498 = vld [vmem:[#allocation3 + $0x360] sm:$0xff]
        %v499 = vld [vmem:[#allocation3 + $0x368] sm:$0xff]
        %v500 = vld [vmem:[#allocation3 + $0x370] sm:$0xff]
        %v501 = vld [vmem:[#allocation3 + $0x378] sm:$0xff]
        %v502 = vld [vmem:[#allocation3 + $0x380] sm:$0xff]
        %v503 = vld [vmem:[#allocation3 + $0x388] sm:$0xff]
        %v504 = vld [vmem:[#allocation3 + $0x390] sm:$0xff]
        %v505 = vld [vmem:[#allocation3 + $0x398] sm:$0xff]
        %v506 = vld [vmem:[#allocation3 + $0x3a0] sm:$0xff]
        %v507 = vld [vmem:[#allocation3 + $0x3a8] sm:$0xff]
        %v508 = vld [vmem:[#allocation3 + $0x3b0] sm:$0xff]
        %v509 = vld [vmem:[#allocation3 + $0x3b8] sm:$0xff]
        %v510 = vld [vmem:[#allocation3 + $0x3c0] sm:$0xff]
        %v511 = vld [vmem:[#allocation3 + $0x3c8] sm:$0xff]
        %v512 = vld [vmem:[#allocation3 + $0x3d0] sm:$0xff]
        %v513 = vld [vmem:[#allocation3 + $0x3d8] sm:$0xff]
        %v514 = vld [vmem:[#allocation3 + $0x3e0] sm:$0xff]
        %v515 = vld [vmem:[#allocation3 + $0x3e8] sm:$0xff]
        %v516 = vld [vmem:[#allocation3 + $0x3f0] sm:$0xff]
        %v517 = vld [vmem:[#allocation3 + $0x3f8] sm:$0xff]
        %v518 = vld [vmem:[#allocation3 + $0x400] sm:$0xff]
        %v519 = vld [vmem:[#allocation3 + $0x408] sm:$0xff]
        %v520 = vld [vmem:[#allocation3 + $0x410] sm:$0xff]
        %v521 = vld [vmem:[#allocation3 + $0x418] sm:$0xff]
        %v522 = vld [vmem:[#allocation3 + $0x420] sm:$0xff]
        %v523 = vld [vmem:[#allocation3 + $0x428] sm:$0xff]
        %v524 = vld [vmem:[#allocation3 + $0x430] sm:$0xff]
        %v525 = vld [vmem:[#allocation3 + $0x438] sm:$0xff]
        %v526 = vld [vmem:[#allocation3 + $0x440] sm:$0xff]
        %v527 = vld [vmem:[#allocation3 + $0x448] sm:$0xff]
        %v528 = vld [vmem:[#allocation3 + $0x450] sm:$0xff]
        %v529 = vld [vmem:[#allocation3 + $0x458] sm:$0xff]
        %v530 = vld [vmem:[#allocation3 + $0x460] sm:$0xff]
        %v531 = vld [vmem:[#allocation3 + $0x468] sm:$0xff]
        %v532 = vld [vmem:[#allocation3 + $0x470] sm:$0xff]
        %v533 = vld [vmem:[#allocation3 + $0x478] sm:$0xff]
        %v534 = vld [vmem:[#allocation3 + $0x480] sm:$0xff]
        %v535 = vld [vmem:[#allocation3 + $0x488] sm:$0xff]
        %v536 = vld [vmem:[#allocation3 + $0x490] sm:$0xff]
        %v537 = vld [vmem:[#allocation3 + $0x498] sm:$0xff]
        %v538 = vld [vmem:[#allocation3 + $0x4a0] sm:$0xff]
        %v539 = vld [vmem:[#allocation3 + $0x4a8] sm:$0xff]
        %v540 = vld [vmem:[#allocation3 + $0x4b0] sm:$0xff]
        %v541 = vld [vmem:[#allocation3 + $0x4b8] sm:$0xff]
        %v542 = vld [vmem:[#allocation3 + $0x4c0] sm:$0xff]
        %v543 = vld [vmem:[#allocation3 + $0x4c8] sm:$0xff]
        %v544 = vld [vmem:[#allocation3 + $0x4d0] sm:$0xff]
        %v545 = vld [vmem:[#allocation3 + $0x4d8] sm:$0xff]
        %v546 = vld [vmem:[#allocation3 + $0x4e0] sm:$0xff]
        %v547 = vld [vmem:[#allocation3 + $0x4e8] sm:$0xff]
        %v548 = vld [vmem:[#allocation3 + $0x4f0] sm:$0xff]
        %v549 = vld [vmem:[#allocation3 + $0x4f8] sm:$0xff]
        %v550 = vld [vmem:[#allocation3 + $0x500] sm:$0xff]
        %v551 = vld [vmem:[#allocation3 + $0x508] sm:$0xff]
        %v552 = vld [vmem:[#allocation3 + $0x510] sm:$0xff]
        %v553 = vld [vmem:[#allocation3 + $0x518] sm:$0xff]
        %v554 = vld [vmem:[#allocation3 + $0x520] sm:$0xff]
        %v555 = vld [vmem:[#allocation3 + $0x528] sm:$0xff]
        %v556 = vld [vmem:[#allocation3 + $0x530] sm:$0xff]
        %v557 = vld [vmem:[#allocation3 + $0x538] sm:$0xff]
        %v558 = vld [vmem:[#allocation3 + $0x540] sm:$0xff]
        %v559 = vld [vmem:[#allocation3 + $0x548] sm:$0xff]
        %v560 = vld [vmem:[#allocation3 + $0x550] sm:$0xff]
        %v561 = vld [vmem:[#allocation3 + $0x558] sm:$0xff]
        %v562 = vld [vmem:[#allocation3 + $0x560] sm:$0xff]
        %v563 = vld [vmem:[#allocation3 + $0x568] sm:$0xff]
        %v564 = vld [vmem:[#allocation3 + $0x570] sm:$0xff]
        %v565 = vld [vmem:[#allocation3 + $0x578] sm:$0xff]
        %v566 = vld [vmem:[#allocation3 + $0x580] sm:$0xff]
        %v567 = vld [vmem:[#allocation3 + $0x588] sm:$0xff]
        %v568 = vld [vmem:[#allocation3 + $0x590] sm:$0xff]
        %v569 = vld [vmem:[#allocation3 + $0x598] sm:$0xff]
        %v570 = vld [vmem:[#allocation3 + $0x5a0] sm:$0xff]
        %v571 = vld [vmem:[#allocation3 + $0x5a8] sm:$0xff]
        %v572 = vld [vmem:[#allocation3 + $0x5b0] sm:$0xff]
        %v573 = vld [vmem:[#allocation3 + $0x5b8] sm:$0xff]
        %v574 = vld [vmem:[#allocation3 + $0x5c0] sm:$0xff]
        %v575 = vld [vmem:[#allocation3 + $0x5c8] sm:$0xff]
        %v576 = vld [vmem:[#allocation3 + $0x5d0] sm:$0xff]
        %v577 = vld [vmem:[#allocation3 + $0x5d8] sm:$0xff]
        %v578 = vld [vmem:[#allocation3 + $0x5e0] sm:$0xff]
        %v579 = vld [vmem:[#allocation3 + $0x5e8] sm:$0xff]
        %v580 = vld [vmem:[#allocation3 + $0x5f0] sm:$0xff]
        %v581 = vld [vmem:[#allocation3 + $0x5f8] sm:$0xff]
        %v582 = vld [vmem:[#allocation3 + $0x600] sm:$0xff]
        %v583 = vld [vmem:[#allocation3 + $0x608] sm:$0xff]
        %v584 = vld [vmem:[#allocation3 + $0x610] sm:$0xff]
        %v585 = vld [vmem:[#allocation3 + $0x618] sm:$0xff]
        %v586 = vld [vmem:[#allocation3 + $0x620] sm:$0xff]
        %v587 = vld [vmem:[#allocation3 + $0x628] sm:$0xff]
        %v588 = vld [vmem:[#allocation3 + $0x630] sm:$0xff]
        %v589 = vld [vmem:[#allocation3 + $0x638] sm:$0xff]
        %v590 = vld [vmem:[#allocation3 + $0x640] sm:$0xff]
        %v591 = vld [vmem:[#allocation3 + $0x648] sm:$0xff]
        %v592 = vld [vmem:[#allocation3 + $0x650] sm:$0xff]
        %v593 = vld [vmem:[#allocation3 + $0x658] sm:$0xff]
        %v594 = vld [vmem:[#allocation3 + $0x660] sm:$0xff]
        %v595 = vld [vmem:[#allocation3 + $0x668] sm:$0xff]
        %v596 = vld [vmem:[#allocation3 + $0x670] sm:$0xff]
        %v597 = vld [vmem:[#allocation3 + $0x678] sm:$0xff]
        %v598 = vld [vmem:[#allocation3 + $0x680] sm:$0xff]
        %v599 = vld [vmem:[#allocation3 + $0x688] sm:$0xff]
        %v600 = vld [vmem:[#allocation3 + $0x690] sm:$0xff]
        %v601 = vld [vmem:[#allocation3 + $0x698] sm:$0xff]
        %v602 = vld [vmem:[#allocation3 + $0x6a0] sm:$0xff]
        %v603 = vld [vmem:[#allocation3 + $0x6a8] sm:$0xff]
        %v604 = vld [vmem:[#allocation3 + $0x6b0] sm:$0xff]
        %v605 = vld [vmem:[#allocation3 + $0x6b8] sm:$0xff]
        %v606 = vld [vmem:[#allocation3 + $0x6c0] sm:$0xff]
        %v607 = vld [vmem:[#allocation3 + $0x6c8] sm:$0xff]
        %v608 = vld [vmem:[#allocation3 + $0x6d0] sm:$0xff]
        %v609 = vld [vmem:[#allocation3 + $0x6d8] sm:$0xff]
        %v610 = vld [vmem:[#allocation3 + $0x6e0] sm:$0xff]
        %v611 = vld [vmem:[#allocation3 + $0x6e8] sm:$0xff]
        %v612 = vld [vmem:[#allocation3 + $0x6f0] sm:$0xff]
        %v613 = vld [vmem:[#allocation3 + $0x6f8] sm:$0xff]
        %v614 = vld [vmem:[%s3] sm:$0xff]
        %v616 = vperm.slane %v389, 0
        %v617 = vperm.slane %v389, 1
        %v621 = vperm.slane %v614, 0
        %v622 = vperm.slane %v614, 1
        %v623 = vperm.slane %v614, 2
        %v624 = vperm.slane %v614, 3
        %v625 = vperm.slane %v614, 4
        %v626 = vperm.slane %v614, 5
        %v627 = vperm.slane %v614, 6
        %635 = vmatpush.msra.mxu0 %v495
        %636 = vmatpush.msra.mxu0 %v488
        %637 = vmatpush.msra.mxu0 %v481
        %638 = vmatpush.msra.mxu0 %v474
        %639 = vmatpush.msra.mxu0 %v467
        %640 = vmatpush.msra.mxu0 %v460
        %641 = vmatpush.msra.mxu0 %v453
        %642 = vmatpush.msra.mxu0 %v446
        %643 = vmatpush.msra.mxu0 %v439
        %644 = vmatpush.msra.mxu0 %v432
        %645 = vmatpush.msra.mxu0 %v425
        %646 = vmatpush.msra.mxu0 %v418
        %647 = vmatpush.msra.mxu0 %v411
        %648 = vmatpush.msra.mxu0 %v404
        %649 = vmatpush.msra.mxu0 %v397
        %650 = vmatpush.msra.mxu0 %v390
        %651 = vmatmul.f32.gmra.mxu0 %v616
        %v652 = vpop.f32.mrf.mxu0
        %v653 = vadd.f32 %v621, %v652
        %654 = vdwg.mxu0
        %655 = vmatpush.msra.mxu0 %v607
        %656 = vmatpush.msra.mxu0 %v600
        %657 = vmatpush.msra.mxu0 %v593
        %658 = vmatpush.msra.mxu0 %v586
        %659 = vmatpush.msra.mxu0 %v579
        %660 = vmatpush.msra.mxu0 %v572
        %661 = vmatpush.msra.mxu0 %v565
        %662 = vmatpush.msra.mxu0 %v558
        %663 = vmatpush.msra.mxu0 %v551
        %664 = vmatpush.msra.mxu0 %v544
        %665 = vmatpush.msra.mxu0 %v537
        %666 = vmatpush.msra.mxu0 %v530
        %667 = vmatpush.msra.mxu0 %v523
        %668 = vmatpush.msra.mxu0 %v516
        %669 = vmatpush.msra.mxu0 %v509
        %670 = vmatpush.msra.mxu0 %v502
        %671 = vmatmul.f32.gmra.mxu0 %v617
        %v672 = vpop.f32.mrf.mxu0
        %v673 = vadd.f32 %v653, %v672
        %674 = vdwg.mxu0
        %675 = vmatpush.msra.mxu0 %v496
        %676 = vmatpush.msra.mxu0 %v489
        %677 = vmatpush.msra.mxu0 %v482
        %678 = vmatpush.msra.mxu0 %v475
        %679 = vmatpush.msra.mxu0 %v468
        %680 = vmatpush.msra.mxu0 %v461
        %681 = vmatpush.msra.mxu0 %v454
        %682 = vmatpush.msra.mxu0 %v447
        %683 = vmatpush.msra.mxu0 %v440
        %684 = vmatpush.msra.mxu0 %v433
        %685 = vmatpush.msra.mxu0 %v426
        %686 = vmatpush.msra.mxu0 %v419
        %687 = vmatpush.msra.mxu0 %v412
        %688 = vmatpush.msra.mxu0 %v405
        %689 = vmatpush.msra.mxu0 %v398
        %690 = vmatpush.msra.mxu0 %v391
        %691 = vmatmul.f32.gmra.mxu0 %v616
        %v692 = vpop.f32.mrf.mxu0
        %v693 = vadd.f32 %v622, %v692
        %694 = vdwg.mxu0
        %695 = vmatpush.msra.mxu0 %v608
        %696 = vmatpush.msra.mxu0 %v601
        %697 = vmatpush.msra.mxu0 %v594
        %698 = vmatpush.msra.mxu0 %v587
        %699 = vmatpush.msra.mxu0 %v580
        %700 = vmatpush.msra.mxu0 %v573
        %701 = vmatpush.msra.mxu0 %v566
        %702 = vmatpush.msra.mxu0 %v559
        %703 = vmatpush.msra.mxu0 %v552
        %704 = vmatpush.msra.mxu0 %v545
        %705 = vmatpush.msra.mxu0 %v538
        %706 = vmatpush.msra.mxu0 %v531
        %707 = vmatpush.msra.mxu0 %v524
        %708 = vmatpush.msra.mxu0 %v517
        %709 = vmatpush.msra.mxu0 %v510
        %710 = vmatpush.msra.mxu0 %v503
        %711 = vmatmul.f32.gmra.mxu0 %v617
        %v712 = vpop.f32.mrf.mxu0
        %v713 = vadd.f32 %v693, %v712
        %714 = vdwg.mxu0
        %715 = vmatpush.msra.mxu0 %v497
        %716 = vmatpush.msra.mxu0 %v490
        %717 = vmatpush.msra.mxu0 %v483
        %718 = vmatpush.msra.mxu0 %v476
        %719 = vmatpush.msra.mxu0 %v469
        %720 = vmatpush.msra.mxu0 %v462
        %721 = vmatpush.msra.mxu0 %v455
        %722 = vmatpush.msra.mxu0 %v448
        %723 = vmatpush.msra.mxu0 %v441
        %724 = vmatpush.msra.mxu0 %v434
        %725 = vmatpush.msra.mxu0 %v427
        %726 = vmatpush.msra.mxu0 %v420
        %727 = vmatpush.msra.mxu0 %v413
        %728 = vmatpush.msra.mxu0 %v406
        %729 = vmatpush.msra.mxu0 %v399
        %730 = vmatpush.msra.mxu0 %v392
        %731 = vmatmul.f32.gmra.mxu0 %v616
        %v732 = vpop.f32.mrf.mxu0
        %v733 = vadd.f32 %v623, %v732
        %734 = vdwg.mxu0
        %735 = vmatpush.msra.mxu0 %v609
        %736 = vmatpush.msra.mxu0 %v602
        %737 = vmatpush.msra.mxu0 %v595
        %738 = vmatpush.msra.mxu0 %v588
        %739 = vmatpush.msra.mxu0 %v581
        %740 = vmatpush.msra.mxu0 %v574
        %741 = vmatpush.msra.mxu0 %v567
        %742 = vmatpush.msra.mxu0 %v560
        %743 = vmatpush.msra.mxu0 %v553
        %744 = vmatpush.msra.mxu0 %v546
        %745 = vmatpush.msra.mxu0 %v539
        %746 = vmatpush.msra.mxu0 %v532
        %747 = vmatpush.msra.mxu0 %v525
        %748 = vmatpush.msra.mxu0 %v518
        %749 = vmatpush.msra.mxu0 %v511
        %750 = vmatpush.msra.mxu0 %v504
        %751 = vmatmul.f32.gmra.mxu0 %v617
        %v752 = vpop.f32.mrf.mxu0
        %v753 = vadd.f32 %v733, %v752
        %754 = vdwg.mxu0
        %755 = vmatpush.msra.mxu0 %v498
        %756 = vmatpush.msra.mxu0 %v491
        %757 = vmatpush.msra.mxu0 %v484
        %758 = vmatpush.msra.mxu0 %v477
        %759 = vmatpush.msra.mxu0 %v470
        %760 = vmatpush.msra.mxu0 %v463
        %761 = vmatpush.msra.mxu0 %v456
        %762 = vmatpush.msra.mxu0 %v449
        %763 = vmatpush.msra.mxu0 %v442
        %764 = vmatpush.msra.mxu0 %v435
        %765 = vmatpush.msra.mxu0 %v428
        %766 = vmatpush.msra.mxu0 %v421
        %767 = vmatpush.msra.mxu0 %v414
        %768 = vmatpush.msra.mxu0 %v407
        %769 = vmatpush.msra.mxu0 %v400
        %770 = vmatpush.msra.mxu0 %v393
        %771 = vmatmul.f32.gmra.mxu0 %v616
        %v772 = vpop.f32.mrf.mxu0
        %v773 = vadd.f32 %v624, %v772
        %774 = vdwg.mxu0
        %775 = vmatpush.msra.mxu0 %v610
        %776 = vmatpush.msra.mxu0 %v603
        %777 = vmatpush.msra.mxu0 %v596
        %778 = vmatpush.msra.mxu0 %v589
        %779 = vmatpush.msra.mxu0 %v582
        %780 = vmatpush.msra.mxu0 %v575
        %781 = vmatpush.msra.mxu0 %v568
        %782 = vmatpush.msra.mxu0 %v561
        %783 = vmatpush.msra.mxu0 %v554
        %784 = vmatpush.msra.mxu0 %v547
        %785 = vmatpush.msra.mxu0 %v540
        %786 = vmatpush.msra.mxu0 %v533
        %787 = vmatpush.msra.mxu0 %v526
        %788 = vmatpush.msra.mxu0 %v519
        %789 = vmatpush.msra.mxu0 %v512
        %790 = vmatpush.msra.mxu0 %v505
        %791 = vmatmul.f32.gmra.mxu0 %v617
        %v792 = vpop.f32.mrf.mxu0
        %v793 = vadd.f32 %v773, %v792
        %794 = vdwg.mxu0
        %795 = vmatpush.msra.mxu0 %v499
        %796 = vmatpush.msra.mxu0 %v492
        %797 = vmatpush.msra.mxu0 %v485
        %798 = vmatpush.msra.mxu0 %v478
        %799 = vmatpush.msra.mxu0 %v471
        %800 = vmatpush.msra.mxu0 %v464
        %801 = vmatpush.msra.mxu0 %v457
        %802 = vmatpush.msra.mxu0 %v450
        %803 = vmatpush.msra.mxu0 %v443
        %804 = vmatpush.msra.mxu0 %v436
        %805 = vmatpush.msra.mxu0 %v429
        %806 = vmatpush.msra.mxu0 %v422
        %807 = vmatpush.msra.mxu0 %v415
        %808 = vmatpush.msra.mxu0 %v408
        %809 = vmatpush.msra.mxu0 %v401
        %810 = vmatpush.msra.mxu0 %v394
        %811 = vmatmul.f32.gmra.mxu0 %v616
        %v812 = vpop.f32.mrf.mxu0
        %v813 = vadd.f32 %v625, %v812
        %814 = vdwg.mxu0
        %815 = vmatpush.msra.mxu0 %v611
        %816 = vmatpush.msra.mxu0 %v604
        %817 = vmatpush.msra.mxu0 %v597
        %818 = vmatpush.msra.mxu0 %v590
        %819 = vmatpush.msra.mxu0 %v583
        %820 = vmatpush.msra.mxu0 %v576
        %821 = vmatpush.msra.mxu0 %v569
        %822 = vmatpush.msra.mxu0 %v562
        %823 = vmatpush.msra.mxu0 %v555
        %824 = vmatpush.msra.mxu0 %v548
        %825 = vmatpush.msra.mxu0 %v541
        %826 = vmatpush.msra.mxu0 %v534
        %827 = vmatpush.msra.mxu0 %v527
        %828 = vmatpush.msra.mxu0 %v520
        %829 = vmatpush.msra.mxu0 %v513
        %830 = vmatpush.msra.mxu0 %v506
        %831 = vmatmul.f32.gmra.mxu0 %v617
        %v832 = vpop.f32.mrf.mxu0
        %v833 = vadd.f32 %v813, %v832
        %834 = vdwg.mxu0
        %835 = vmatpush.msra.mxu0 %v500
        %836 = vmatpush.msra.mxu0 %v493
        %837 = vmatpush.msra.mxu0 %v486
        %838 = vmatpush.msra.mxu0 %v479
        %839 = vmatpush.msra.mxu0 %v472
        %840 = vmatpush.msra.mxu0 %v465
        %841 = vmatpush.msra.mxu0 %v458
        %842 = vmatpush.msra.mxu0 %v451
        %843 = vmatpush.msra.mxu0 %v444
        %844 = vmatpush.msra.mxu0 %v437
        %845 = vmatpush.msra.mxu0 %v430
        %846 = vmatpush.msra.mxu0 %v423
        %847 = vmatpush.msra.mxu0 %v416
        %848 = vmatpush.msra.mxu0 %v409
        %849 = vmatpush.msra.mxu0 %v402
        %850 = vmatpush.msra.mxu0 %v395
        %851 = vmatmul.f32.gmra.mxu0 %v616
        %v852 = vpop.f32.mrf.mxu0
        %v853 = vadd.f32 %v626, %v852
        %854 = vdwg.mxu0
        %855 = vmatpush.msra.mxu0 %v612
        %856 = vmatpush.msra.mxu0 %v605
        %857 = vmatpush.msra.mxu0 %v598
        %858 = vmatpush.msra.mxu0 %v591
        %859 = vmatpush.msra.mxu0 %v584
        %860 = vmatpush.msra.mxu0 %v577
        %861 = vmatpush.msra.mxu0 %v570
        %862 = vmatpush.msra.mxu0 %v563
        %863 = vmatpush.msra.mxu0 %v556
        %864 = vmatpush.msra.mxu0 %v549
        %865 = vmatpush.msra.mxu0 %v542
        %866 = vmatpush.msra.mxu0 %v535
        %867 = vmatpush.msra.mxu0 %v528
        %868 = vmatpush.msra.mxu0 %v521
        %869 = vmatpush.msra.mxu0 %v514
        %870 = vmatpush.msra.mxu0 %v507
        %871 = vmatmul.f32.gmra.mxu0 %v617
        %v872 = vpop.f32.mrf.mxu0
        %v873 = vadd.f32 %v853, %v872
        %874 = vdwg.mxu0
        %875 = vmatpush.msra.mxu0 %v501
        %876 = vmatpush.msra.mxu0 %v494
        %877 = vmatpush.msra.mxu0 %v487
        %878 = vmatpush.msra.mxu0 %v480
        %879 = vmatpush.msra.mxu0 %v473
        %880 = vmatpush.msra.mxu0 %v466
        %881 = vmatpush.msra.mxu0 %v459
        %882 = vmatpush.msra.mxu0 %v452
        %883 = vmatpush.msra.mxu0 %v445
        %884 = vmatpush.msra.mxu0 %v438
        %885 = vmatpush.msra.mxu0 %v431
        %886 = vmatpush.msra.mxu0 %v424
        %887 = vmatpush.msra.mxu0 %v417
        %888 = vmatpush.msra.mxu0 %v410
        %889 = vmatpush.msra.mxu0 %v403
        %890 = vmatpush.msra.mxu0 %v396
        %891 = vmatmul.f32.gmra.mxu0 %v616
        %v892 = vpop.f32.mrf.mxu0
        %v893 = vadd.f32 %v627, %v892
        %894 = vdwg.mxu0
        %895 = vmatpush.msra.mxu0 %v613
        %896 = vmatpush.msra.mxu0 %v606
        %897 = vmatpush.msra.mxu0 %v599
        %898 = vmatpush.msra.mxu0 %v592
        %899 = vmatpush.msra.mxu0 %v585
        %900 = vmatpush.msra.mxu0 %v578
        %901 = vmatpush.msra.mxu0 %v571
        %902 = vmatpush.msra.mxu0 %v564
        %903 = vmatpush.msra.mxu0 %v557
        %904 = vmatpush.msra.mxu0 %v550
        %905 = vmatpush.msra.mxu0 %v543
        %906 = vmatpush.msra.mxu0 %v536
        %907 = vmatpush.msra.mxu0 %v529
        %908 = vmatpush.msra.mxu0 %v522
        %909 = vmatpush.msra.mxu0 %v515
        %910 = vmatpush.msra.mxu0 %v508
        %911 = vmatmul.f32.gmra.mxu0 %v617
        %v912 = vpop.f32.mrf.mxu0
        %v913 = vadd.f32 %v893, %v912
        %914 = vdwg.mxu0
        %v915 = vadd.f32 %v673, %v793
        %v916 = vxor.u32 %v915, 2147483648
        %v917 = vmul.f32 %v916, 1.442695
        %v918 = vpow.pop %v917
        %v919 = vadd.f32 %v918, 1.0
        %v920 = vrcp.pop %v919
        %v921 = vmul.f32 %v919, %v920
        %v922 = vsub.f32 1.0, %v921
        %v923 = vmul.f32 %v920, %v922
        %v924 = vadd.f32 %v920, %v923
        %vm925 = vweird.f32 %v919
        %vm926 = vweird.f32 %v920
        %vm927 = vmor %vm925, %vm926
        %v928 = vsel %vm927, %v920, %v924
        %v929 = vand.u32 2147483647, %v919
        %vm930 = vcmp.eq.f32.partialorder %v929, 8.507059e+37
        %v931 = vand.u32 %v919, 2147483648
        %v932 = vor.u32 1.1754944e-38, %v931
        %v933 = vsel %vm930, %v932, %v928
        %v934 = vmul.f32 1.0, %v933
        %v935 = vadd.f32 %v713, %v833
        %v936 = vxor.u32 %v935, 2147483648
        %v937 = vmul.f32 %v936, 1.442695
        %v938 = vpow.pop %v937
        %v939 = vadd.f32 %v938, 1.0
        %v940 = vrcp.pop %v939
        %v941 = vmul.f32 %v939, %v940
        %v942 = vsub.f32 1.0, %v941
        %v943 = vmul.f32 %v940, %v942
        %v944 = vadd.f32 %v940, %v943
        %vm945 = vweird.f32 %v939
        %vm946 = vweird.f32 %v940
        %vm947 = vmor %vm945, %vm946
        %v948 = vsel %vm947, %v940, %v944
        %v949 = vand.u32 2147483647, %v939
        %vm950 = vcmp.eq.f32.partialorder %v949, 8.507059e+37
        %v951 = vand.u32 %v939, 2147483648
        %v952 = vor.u32 1.1754944e-38, %v951
        %v953 = vsel %vm950, %v952, %v948
        %v954 = vmul.f32 1.0, %v953
        %v955 = vmul.f32 %v934, %v873
        %v956 = vadd.f32 %v753, %v955
        %v957 = vtanh.pop %v956
        %v958 = vsub.f32 1.0, %v954
        %v959 = vmul.f32 %v958, %v957
        %v960 = vmul.f32 %v954, %v388
        %v961 = vadd.f32 %v959, %v960
        %v962 = vld [vmem:[#allocation6] sm:$0xff]
        %v963 = vld [vmem:[#allocation6 + $0x8] sm:$0xff]
        %v964 = vld [vmem:[#allocation6 + $0x10] sm:$0xff]
        %v965 = vld [vmem:[#allocation6 + $0x18] sm:$0xff]
        %v966 = vld [vmem:[#allocation6 + $0x20] sm:$0xff]
        %v967 = vld [vmem:[#allocation6 + $0x28] sm:$0xff]
        %v968 = vld [vmem:[#allocation6 + $0x30] sm:$0xff]
        %v969 = vld [vmem:[#allocation6 + $0x38] sm:$0xff]
        %v970 = vld [vmem:[#allocation6 + $0x40] sm:$0xff]
        %v971 = vld [vmem:[#allocation6 + $0x48] sm:$0xff]
        %v972 = vld [vmem:[#allocation6 + $0x50] sm:$0xff]
        %v973 = vld [vmem:[#allocation6 + $0x58] sm:$0xff]
        %v974 = vld [vmem:[#allocation6 + $0x60] sm:$0xff]
        %v975 = vld [vmem:[#allocation6 + $0x68] sm:$0xff]
        %v976 = vld [vmem:[#allocation6 + $0x70] sm:$0xff]
        %v977 = vld [vmem:[#allocation6 + $0x78] sm:$0xff]
        %v978 = vld [vmem:[#allocation6 + $0x80] sm:$0xff]
        %v979 = vld [vmem:[#allocation6 + $0x88] sm:$0xff]
        %v980 = vld [vmem:[#allocation6 + $0x90] sm:$0xff]
        %v981 = vld [vmem:[#allocation6 + $0x98] sm:$0xff]
        %v982 = vld [vmem:[#allocation6 + $0xa0] sm:$0xff]
        %v983 = vld [vmem:[#allocation6 + $0xa8] sm:$0xff]
        %v984 = vld [vmem:[#allocation6 + $0xb0] sm:$0xff]
        %v985 = vld [vmem:[#allocation6 + $0xb8] sm:$0xff]
        %v986 = vld [vmem:[#allocation6 + $0xc0] sm:$0xff]
        %v987 = vld [vmem:[#allocation6 + $0xc8] sm:$0xff]
        %v988 = vld [vmem:[#allocation6 + $0xd0] sm:$0xff]
        %v989 = vld [vmem:[#allocation6 + $0xd8] sm:$0xff]
        %v990 = vld [vmem:[#allocation6 + $0xe0] sm:$0xff]
        %v991 = vld [vmem:[#allocation6 + $0xe8] sm:$0xff]
        %v992 = vld [vmem:[#allocation6 + $0xf0] sm:$0xff]
        %v993 = vld [vmem:[#allocation6 + $0xf8] sm:$0xff]
        %v994 = vld [vmem:[#allocation6 + $0x100] sm:$0xff]
        %v995 = vld [vmem:[#allocation6 + $0x108] sm:$0xff]
        %v996 = vld [vmem:[#allocation6 + $0x110] sm:$0xff]
        %v997 = vld [vmem:[#allocation6 + $0x118] sm:$0xff]
        %v998 = vld [vmem:[#allocation6 + $0x120] sm:$0xff]
        %v999 = vld [vmem:[#allocation6 + $0x128] sm:$0xff]
        %v1000 = vld [vmem:[#allocation6 + $0x130] sm:$0xff]
        %v1001 = vld [vmem:[#allocation6 + $0x138] sm:$0xff]
        %v1002 = vld [vmem:[#allocation6 + $0x140] sm:$0xff]
        %v1003 = vld [vmem:[#allocation6 + $0x148] sm:$0xff]
        %v1004 = vld [vmem:[#allocation6 + $0x150] sm:$0xff]
        %v1005 = vld [vmem:[#allocation6 + $0x158] sm:$0xff]
        %v1006 = vld [vmem:[#allocation6 + $0x160] sm:$0xff]
        %v1007 = vld [vmem:[#allocation6 + $0x168] sm:$0xff]
        %v1008 = vld [vmem:[#allocation6 + $0x170] sm:$0xff]
        %v1009 = vld [vmem:[#allocation6 + $0x178] sm:$0xff]
        %v1010 = vld [vmem:[#allocation6 + $0x180] sm:$0xff]
        %v1011 = vld [vmem:[#allocation6 + $0x188] sm:$0xff]
        %v1012 = vld [vmem:[#allocation6 + $0x190] sm:$0xff]
        %v1013 = vld [vmem:[#allocation6 + $0x198] sm:$0xff]
        %v1014 = vld [vmem:[#allocation6 + $0x1a0] sm:$0xff]
        %v1015 = vld [vmem:[#allocation6 + $0x1a8] sm:$0xff]
        %v1016 = vld [vmem:[#allocation6 + $0x1b0] sm:$0xff]
        %v1017 = vld [vmem:[#allocation6 + $0x1b8] sm:$0xff]
        %v1018 = vld [vmem:[#allocation6 + $0x1c0] sm:$0xff]
        %v1019 = vld [vmem:[#allocation6 + $0x1c8] sm:$0xff]
        %v1020 = vld [vmem:[#allocation6 + $0x1d0] sm:$0xff]
        %v1021 = vld [vmem:[#allocation6 + $0x1d8] sm:$0xff]
        %v1022 = vld [vmem:[#allocation6 + $0x1e0] sm:$0xff]
        %v1023 = vld [vmem:[#allocation6 + $0x1e8] sm:$0xff]
        %v1024 = vld [vmem:[#allocation6 + $0x1f0] sm:$0xff]
        %v1025 = vld [vmem:[#allocation6 + $0x1f8] sm:$0xff]
        %v1026 = vld [vmem:[#allocation6 + $0x200] sm:$0xff]
        %v1027 = vld [vmem:[#allocation6 + $0x208] sm:$0xff]
        %v1028 = vld [vmem:[#allocation6 + $0x210] sm:$0xff]
        %v1029 = vld [vmem:[#allocation6 + $0x218] sm:$0xff]
        %v1030 = vld [vmem:[#allocation6 + $0x220] sm:$0xff]
        %v1031 = vld [vmem:[#allocation6 + $0x228] sm:$0xff]
        %v1032 = vld [vmem:[#allocation6 + $0x230] sm:$0xff]
        %v1033 = vld [vmem:[#allocation6 + $0x238] sm:$0xff]
        %v1034 = vld [vmem:[#allocation6 + $0x240] sm:$0xff]
        %v1035 = vld [vmem:[#allocation6 + $0x248] sm:$0xff]
        %v1036 = vld [vmem:[#allocation6 + $0x250] sm:$0xff]
        %v1037 = vld [vmem:[#allocation6 + $0x258] sm:$0xff]
        %v1038 = vld [vmem:[#allocation6 + $0x260] sm:$0xff]
        %v1039 = vld [vmem:[#allocation6 + $0x268] sm:$0xff]
        %v1040 = vld [vmem:[#allocation6 + $0x270] sm:$0xff]
        %v1041 = vld [vmem:[#allocation6 + $0x278] sm:$0xff]
        %v1042 = vld [vmem:[#allocation6 + $0x280] sm:$0xff]
        %v1043 = vld [vmem:[#allocation6 + $0x288] sm:$0xff]
        %v1044 = vld [vmem:[#allocation6 + $0x290] sm:$0xff]
        %v1045 = vld [vmem:[#allocation6 + $0x298] sm:$0xff]
        %v1046 = vld [vmem:[#allocation6 + $0x2a0] sm:$0xff]
        %v1047 = vld [vmem:[#allocation6 + $0x2a8] sm:$0xff]
        %v1048 = vld [vmem:[#allocation6 + $0x2b0] sm:$0xff]
        %v1049 = vld [vmem:[#allocation6 + $0x2b8] sm:$0xff]
        %v1050 = vld [vmem:[#allocation6 + $0x2c0] sm:$0xff]
        %v1051 = vld [vmem:[#allocation6 + $0x2c8] sm:$0xff]
        %v1052 = vld [vmem:[#allocation6 + $0x2d0] sm:$0xff]
        %v1053 = vld [vmem:[#allocation6 + $0x2d8] sm:$0xff]
        %v1054 = vld [vmem:[#allocation6 + $0x2e0] sm:$0xff]
        %v1055 = vld [vmem:[#allocation6 + $0x2e8] sm:$0xff]
        %v1056 = vld [vmem:[#allocation6 + $0x2f0] sm:$0xff]
        %v1057 = vld [vmem:[#allocation6 + $0x2f8] sm:$0xff]
        %v1058 = vld [vmem:[%s5] sm:$0x3f]
        %v1060 = vperm.slane %v1058, 0
        %v1061 = vperm.slane %v1058, 1
        %v1062 = vperm.slane %v1058, 2
        %v1063 = vperm.slane %v1058, 3
        %v1064 = vperm.slane %v1058, 4
        %v1065 = vperm.slane %v1058, 5
        %1072 = vmatpush.msra.mxu0 %v1052
        %1073 = vmatpush.msra.mxu0 %v1046
        %1074 = vmatpush.msra.mxu0 %v1040
        %1075 = vmatpush.msra.mxu0 %v1034
        %1076 = vmatpush.msra.mxu0 %v1028
        %1077 = vmatpush.msra.mxu0 %v1022
        %1078 = vmatpush.msra.mxu0 %v1016
        %1079 = vmatpush.msra.mxu0 %v1010
        %1080 = vmatpush.msra.mxu0 %v1004
        %1081 = vmatpush.msra.mxu0 %v998
        %1082 = vmatpush.msra.mxu0 %v992
        %1083 = vmatpush.msra.mxu0 %v986
        %1084 = vmatpush.msra.mxu0 %v980
        %1085 = vmatpush.msra.mxu0 %v974
        %1086 = vmatpush.msra.mxu0 %v968
        %1087 = vmatpush.msra.mxu0 %v962
        %1088 = vmatmul.f32.gmra.mxu0 %v961
        %v1089 = vpop.f32.mrf.mxu0
        %v1090 = vadd.f32 %v1060, %v1089
        %1091 = vdwg.mxu0
        %1092 = vmatpush.msra.mxu0 %v1053
        %1093 = vmatpush.msra.mxu0 %v1047
        %1094 = vmatpush.msra.mxu0 %v1041
        %1095 = vmatpush.msra.mxu0 %v1035
        %1096 = vmatpush.msra.mxu0 %v1029
        %1097 = vmatpush.msra.mxu0 %v1023
        %1098 = vmatpush.msra.mxu0 %v1017
        %1099 = vmatpush.msra.mxu0 %v1011
        %1100 = vmatpush.msra.mxu0 %v1005
        %1101 = vmatpush.msra.mxu0 %v999
        %1102 = vmatpush.msra.mxu0 %v993
        %1103 = vmatpush.msra.mxu0 %v987
        %1104 = vmatpush.msra.mxu0 %v981
        %1105 = vmatpush.msra.mxu0 %v975
        %1106 = vmatpush.msra.mxu0 %v969
        %1107 = vmatpush.msra.mxu0 %v963
        %1108 = vmatmul.f32.gmra.mxu0 %v961
        %v1109 = vpop.f32.mrf.mxu0
        %v1110 = vadd.f32 %v1061, %v1109
        %1111 = vdwg.mxu0
        %1112 = vmatpush.msra.mxu0 %v1054
        %1113 = vmatpush.msra.mxu0 %v1048
        %1114 = vmatpush.msra.mxu0 %v1042
        %1115 = vmatpush.msra.mxu0 %v1036
        %1116 = vmatpush.msra.mxu0 %v1030
        %1117 = vmatpush.msra.mxu0 %v1024
        %1118 = vmatpush.msra.mxu0 %v1018
        %1119 = vmatpush.msra.mxu0 %v1012
        %1120 = vmatpush.msra.mxu0 %v1006
        %1121 = vmatpush.msra.mxu0 %v1000
        %1122 = vmatpush.msra.mxu0 %v994
        %1123 = vmatpush.msra.mxu0 %v988
        %1124 = vmatpush.msra.mxu0 %v982
        %1125 = vmatpush.msra.mxu0 %v976
        %1126 = vmatpush.msra.mxu0 %v970
        %1127 = vmatpush.msra.mxu0 %v964
        %1128 = vmatmul.f32.gmra.mxu0 %v961
        %v1129 = vpop.f32.mrf.mxu0
        %v1130 = vadd.f32 %v1062, %v1129
        %1131 = vdwg.mxu0
        %1132 = vmatpush.msra.mxu0 %v1055
        %1133 = vmatpush.msra.mxu0 %v1049
        %1134 = vmatpush.msra.mxu0 %v1043
        %1135 = vmatpush.msra.mxu0 %v1037
        %1136 = vmatpush.msra.mxu0 %v1031
        %1137 = vmatpush.msra.mxu0 %v1025
        %1138 = vmatpush.msra.mxu0 %v1019
        %1139 = vmatpush.msra.mxu0 %v1013
        %1140 = vmatpush.msra.mxu0 %v1007
        %1141 = vmatpush.msra.mxu0 %v1001
        %1142 = vmatpush.msra.mxu0 %v995
        %1143 = vmatpush.msra.mxu0 %v989
        %1144 = vmatpush.msra.mxu0 %v983
        %1145 = vmatpush.msra.mxu0 %v977
        %1146 = vmatpush.msra.mxu0 %v971
        %1147 = vmatpush.msra.mxu0 %v965
        %1148 = vmatmul.f32.gmra.mxu0 %v961
        %v1149 = vpop.f32.mrf.mxu0
        %v1150 = vadd.f32 %v1063, %v1149
        %1151 = vdwg.mxu0
        %1152 = vmatpush.msra.mxu0 %v1056
        %1153 = vmatpush.msra.mxu0 %v1050
        %1154 = vmatpush.msra.mxu0 %v1044
        %1155 = vmatpush.msra.mxu0 %v1038
        %1156 = vmatpush.msra.mxu0 %v1032
        %1157 = vmatpush.msra.mxu0 %v1026
        %1158 = vmatpush.msra.mxu0 %v1020
        %1159 = vmatpush.msra.mxu0 %v1014
        %1160 = vmatpush.msra.mxu0 %v1008
        %1161 = vmatpush.msra.mxu0 %v1002
        %1162 = vmatpush.msra.mxu0 %v996
        %1163 = vmatpush.msra.mxu0 %v990
        %1164 = vmatpush.msra.mxu0 %v984
        %1165 = vmatpush.msra.mxu0 %v978
        %1166 = vmatpush.msra.mxu0 %v972
        %1167 = vmatpush.msra.mxu0 %v966
        %1168 = vmatmul.f32.gmra.mxu0 %v961
        %v1169 = vpop.f32.mrf.mxu0
        %v1170 = vadd.f32 %v1064, %v1169
        %1171 = vdwg.mxu0
        %1172 = vmatpush.msra.mxu0 %v1057
        %1173 = vmatpush.msra.mxu0 %v1051
        %1174 = vmatpush.msra.mxu0 %v1045
        %1175 = vmatpush.msra.mxu0 %v1039
        %1176 = vmatpush.msra.mxu0 %v1033
        %1177 = vmatpush.msra.mxu0 %v1027
        %1178 = vmatpush.msra.mxu0 %v1021
        %1179 = vmatpush.msra.mxu0 %v1015
        %1180 = vmatpush.msra.mxu0 %v1009
        %1181 = vmatpush.msra.mxu0 %v1003
        %1182 = vmatpush.msra.mxu0 %v997
        %1183 = vmatpush.msra.mxu0 %v991
        %1184 = vmatpush.msra.mxu0 %v985
        %1185 = vmatpush.msra.mxu0 %v979
        %1186 = vmatpush.msra.mxu0 %v973
        %1187 = vmatpush.msra.mxu0 %v967
        %1188 = vmatmul.f32.gmra.mxu0 %v961
        %v1189 = vpop.f32.mrf.mxu0
        %v1190 = vadd.f32 %v1065, %v1189
        %1191 = vdwg.mxu0
        %v1192 = vadd.f32 %v1090, %v1150
        %v1193 = vxor.u32 %v1192, 2147483648
        %v1194 = vmul.f32 %v1193, 1.442695
        %v1195 = vpow.pop %v1194
        %v1196 = vadd.f32 %v1195, 1.0
        %v1197 = vrcp.pop %v1196
        %v1198 = vmul.f32 %v1196, %v1197
        %v1199 = vsub.f32 1.0, %v1198
        %v1200 = vmul.f32 %v1197, %v1199
        %v1201 = vadd.f32 %v1197, %v1200
        %vm1202 = vweird.f32 %v1196
        %vm1203 = vweird.f32 %v1197
        %vm1204 = vmor %vm1202, %vm1203
        %v1205 = vsel %vm1204, %v1197, %v1201
        %v1206 = vand.u32 2147483647, %v1196
        %vm1207 = vcmp.eq.f32.partialorder %v1206, 8.507059e+37
        %v1208 = vand.u32 %v1196, 2147483648
        %v1209 = vor.u32 1.1754944e-38, %v1208
        %v1210 = vsel %vm1207, %v1209, %v1205
        %v1211 = vmul.f32 1.0, %v1210
        %v1212 = vadd.f32 %v1110, %v1170
        %v1213 = vxor.u32 %v1212, 2147483648
        %v1214 = vmul.f32 %v1213, 1.442695
        %v1215 = vpow.pop %v1214
        %v1216 = vadd.f32 %v1215, 1.0
        %v1217 = vrcp.pop %v1216
        %v1218 = vmul.f32 %v1216, %v1217
        %v1219 = vsub.f32 1.0, %v1218
        %v1220 = vmul.f32 %v1217, %v1219
        %v1221 = vadd.f32 %v1217, %v1220
        %vm1222 = vweird.f32 %v1216
        %vm1223 = vweird.f32 %v1217
        %vm1224 = vmor %vm1222, %vm1223
        %v1225 = vsel %vm1224, %v1217, %v1221
        %v1226 = vand.u32 2147483647, %v1216
        %vm1227 = vcmp.eq.f32.partialorder %v1226, 8.507059e+37
        %v1228 = vand.u32 %v1216, 2147483648
        %v1229 = vor.u32 1.1754944e-38, %v1228
        %v1230 = vsel %vm1227, %v1229, %v1225
        %v1231 = vmul.f32 1.0, %v1230
        %v1232 = vmul.f32 %v1211, %v1190
        %v1233 = vadd.f32 %v1130, %v1232
        %v1234 = vtanh.pop %v1233
        %v1235 = vsub.f32 1.0, %v1231
        %v1236 = vmul.f32 %v1235, %v1234
        %v1237 = vmul.f32 %v1231, %v961
        %v1238 = vadd.f32 %v1236, %v1237
        %v1239 = vld [vmem:[#allocation8] sm:$0xff]
        %v1240 = vld [vmem:[#allocation8 + $0x8] sm:$0xff]
        %v1241 = vld [vmem:[#allocation8 + $0x10] sm:$0xff]
        %v1242 = vld [vmem:[#allocation8 + $0x18] sm:$0xff]
        %v1243 = vld [vmem:[#allocation8 + $0x20] sm:$0xff]
        %v1244 = vld [vmem:[#allocation8 + $0x28] sm:$0xff]
        %v1245 = vld [vmem:[#allocation8 + $0x30] sm:$0xff]
        %v1246 = vld [vmem:[#allocation8 + $0x38] sm:$0xff]
        %v1247 = vld [vmem:[#allocation8 + $0x40] sm:$0xff]
        %v1248 = vld [vmem:[#allocation8 + $0x48] sm:$0xff]
        %v1249 = vld [vmem:[#allocation8 + $0x50] sm:$0xff]
        %v1250 = vld [vmem:[#allocation8 + $0x58] sm:$0xff]
        %v1251 = vld [vmem:[#allocation8 + $0x60] sm:$0xff]
        %v1252 = vld [vmem:[#allocation8 + $0x68] sm:$0xff]
        %v1253 = vld [vmem:[#allocation8 + $0x70] sm:$0xff]
        %v1254 = vld [vmem:[#allocation8 + $0x78] sm:$0xff]
        %v1255 = vld [vmem:[#allocation8 + $0x80] sm:$0xff]
        %v1256 = vld [vmem:[#allocation8 + $0x88] sm:$0xff]
        %v1257 = vld [vmem:[#allocation8 + $0x90] sm:$0xff]
        %v1258 = vld [vmem:[#allocation8 + $0x98] sm:$0xff]
        %v1259 = vld [vmem:[#allocation8 + $0xa0] sm:$0xff]
        %v1260 = vld [vmem:[#allocation8 + $0xa8] sm:$0xff]
        %v1261 = vld [vmem:[#allocation8 + $0xb0] sm:$0xff]
        %v1262 = vld [vmem:[#allocation8 + $0xb8] sm:$0xff]
        %v1263 = vld [vmem:[#allocation8 + $0xc0] sm:$0xff]
        %v1264 = vld [vmem:[#allocation8 + $0xc8] sm:$0xff]
        %v1265 = vld [vmem:[#allocation8 + $0xd0] sm:$0xff]
        %v1266 = vld [vmem:[#allocation8 + $0xd8] sm:$0xff]
        %v1267 = vld [vmem:[#allocation8 + $0xe0] sm:$0xff]
        %v1268 = vld [vmem:[#allocation8 + $0xe8] sm:$0xff]
        %v1269 = vld [vmem:[#allocation8 + $0xf0] sm:$0xff]
        %v1270 = vld [vmem:[#allocation8 + $0xf8] sm:$0xff]
        %v1271 = vld [vmem:[%s7] sm:$0x3]
        %v1273 = vperm.slane %v1271, 0
        %v1274 = vperm.slane %v1271, 1
        %1277 = vmatpush.msra.mxu0 %v1269
        %1278 = vmatpush.msra.mxu0 %v1267
        %1279 = vmatpush.msra.mxu0 %v1265
        %1280 = vmatpush.msra.mxu0 %v1263
        %1281 = vmatpush.msra.mxu0 %v1261
        %1282 = vmatpush.msra.mxu0 %v1259
        %1283 = vmatpush.msra.mxu0 %v1257
        %1284 = vmatpush.msra.mxu0 %v1255
        %1285 = vmatpush.msra.mxu0 %v1253
        %1286 = vmatpush.msra.mxu0 %v1251
        %1287 = vmatpush.msra.mxu0 %v1249
        %1288 = vmatpush.msra.mxu0 %v1247
        %1289 = vmatpush.msra.mxu0 %v1245
        %1290 = vmatpush.msra.mxu0 %v1243
        %1291 = vmatpush.msra.mxu0 %v1241
        %1292 = vmatpush.msra.mxu0 %v1239
        %1293 = vmatmul.f32.gmra.mxu0 %v1238
        %v1294 = vpop.f32.mrf.mxu0
        %v1295 = vadd.f32 %v1273, %v1294
        %1296 = vdwg.mxu0
        %1297 = vmatpush.msra.mxu0 %v1270
        %1298 = vmatpush.msra.mxu0 %v1268
        %1299 = vmatpush.msra.mxu0 %v1266
        %1300 = vmatpush.msra.mxu0 %v1264
        %1301 = vmatpush.msra.mxu0 %v1262
        %1302 = vmatpush.msra.mxu0 %v1260
        %1303 = vmatpush.msra.mxu0 %v1258
        %1304 = vmatpush.msra.mxu0 %v1256
        %1305 = vmatpush.msra.mxu0 %v1254
        %1306 = vmatpush.msra.mxu0 %v1252
        %1307 = vmatpush.msra.mxu0 %v1250
        %1308 = vmatpush.msra.mxu0 %v1248
        %1309 = vmatpush.msra.mxu0 %v1246
        %1310 = vmatpush.msra.mxu0 %v1244
        %1311 = vmatpush.msra.mxu0 %v1242
        %1312 = vmatpush.msra.mxu0 %v1240
        %1313 = vmatmul.f32.gmra.mxu0 %v1238
        %v1314 = vpop.f32.mrf.mxu0
        %v1315 = vadd.f32 %v1274, %v1314
        %1316 = vdwg.mxu0
        %v1317 = vadd.f32 %v913, %v1315
        %vm1318 = vcmask 1040384
        %v1319 = vsel %vm1318, %v1317, -inf
        %1320 = vmax.xlane.f32.xlu0 %v1319
        %v1321 = vpop.xlane.xlu0 %1320
        %v1322 = vsub.f32 %v1317, %v1321
        %v1323 = vmul.f32 %v1322, 1.442695
        %v1324 = vpow.pop %v1323
        %v1325 = vsel %vm1318, %v1324, 0.0
        %1326 = vadd.xlane.f32.xlu0 %v1325
        %v1327 = vpop.xlane.xlu0 %1326
        %v1328 = vlog2.pop %v1327
        %v1329 = vmul.f32 %v1328, 0.6931472
        %v1330 = vadd.f32 %v1329, %v1321
        %v1331 = vsub.f32 %v1317, %v1330
        %1332 = vst [vmem:[%s366] sm:$0x1] %v1331
        %1333 = vst [vmem:[%s9] sm:$0x1] %v1295
        %1334 = vst.msk [vmem:[#allocation2 + $0x1] sm:$0x1] %vm386, %v1295
        %s1335 = sand.u32 %s207, 1
        %s1336 = scalar_lea.sflag [#allocation5], %s1335
        %s1337 = sand.u32 %s207, 1
        %s1338 = scalar_lea.vmem [#allocation9], %s1337
        // Predicated region
        $region69: #{rnn_sequence.1} parent=51 // pred_check
          %p1339 = pneg %p217
        $region70: #{rnn_sequence.1} parent=51 // pred_check_branch
          %1341 = sbr.rel (%p1339) target = $region72
        $region71: #{rnn_sequence.1} parent=51 // pred_region
          %1343 = vsyncadd %s1336, 0
          %s1344 = scalar_lea.hbm %s8, %s26
          %s1346 = sshll.u32 %s1338, 4
          %s1347 = int_to_ptr.vmem [resolvable:$true] %s1346
          %s1348 = sshll.u32 %s1344, 4
          %s1349 = int_to_ptr.hbm [resolvable:$true] %s1348
          %1351 = dma.vmem_to_hbm [thread:$0]  %s1347, 16, %s1349, %s1336
        $region72: #{rnn_sequence.1} parent=51 // pred_fallthru
          _
        // Predicated region
        $region73: #{rnn_sequence.1} parent=51 // pred_check
          %p1352 = pneg %p238
        $region74: #{rnn_sequence.1} parent=51 // pred_check_branch
          %1354 = sbr.rel (%p1352) target = $region76
        $region75: #{rnn_sequence.1} parent=51 // pred_region
          _
        $region76: #{rnn_sequence.1} parent=51 // pred_fallthru
          _
        // Predicated region
        $region77: #{rnn_sequence.1} parent=51 // pred_check
          %p1355 = pneg %p238
        $region78: #{rnn_sequence.1} parent=51 // pred_check_branch
          %1357 = sbr.rel (%p1355) target = $region80
        $region79: #{rnn_sequence.1} parent=51 // pred_region
          _
        $region80: #{rnn_sequence.1} parent=51 // pred_fallthru
          _
      $region52: #{rnn_sequence.1} parent=5 // pred_fallthru
        _
      %p1358 = scmp.le.s32.totalorder 2, %s21
      // Predicated region
      $region81: #{rnn_sequence.1} parent=5 // pred_check
        %p1359 = pneg %p1358
      $region82: #{rnn_sequence.1} parent=5 // pred_check_branch
        %1361 = sbr.rel (%p1359) target = $region84
      $region83: #{rnn_sequence.1} parent=5 // pred_region
        %s1362 = ssub.s32 %s21, 2
        // Predicated region
        $region85: #{rnn_sequence.1} parent=83 // pred_check
          %p1363 = pneg %p223
        $region86: #{rnn_sequence.1} parent=83 // pred_check_branch
          %1365 = sbr.rel (%p1363) target = $region88
        $region87: #{rnn_sequence.1} parent=83 // pred_region
          %s1366 = sand.u32 %s208, 1
          %s1367 = scalar_lea.sflag [#allocation5], %s1366
          %s1368 = sand.u32 %s208, 1
          %s1369 = scalar_lea.vmem [#allocation9], %s1368
          %1371 = dma.done %s1367, 16
        $region88: #{rnn_sequence.1} parent=83 // pred_fallthru
          _
      $region84: #{rnn_sequence.1} parent=5 // pred_fallthru
        _
    $region6: #{rnn_sequence.1} parent=1 // loop_footer
      %s25 = sadd.s32 1, %s21
    $region7: #{rnn_sequence.1} parent=1 // loop_footer_branch
      %20 = sbr.rel target = $region3
    $region8: #{rnn_sequence.1} parent=1 // loop_exit
      _
    %1372 = vsyncpa [#allocation4], 1
    %s1373 = scalar_lea.sflag [#allocation4], 1
    %1374 = vsyncpa %s1373, 1
    %1375 = vsyncpa [#allocation7], 1
    %1376 = vsyncpa [#allocation5], 1
    %s1377 = scalar_lea.sflag [#allocation5], 1
    %1378 = vsyncpa %s1377, 1

</llo_original>
